<compile_context>
chip_gen: v7x
topology: tpu7x:2x2x1
jax: 0.10.0
libtpu: 0.0.40
codegen_flags: <defaults>
</compile_context>

<pallas_src>
import math

import jax
import jax.numpy as jnp
from jax import lax
from jax.experimental import pallas as pl
from jax.experimental.pallas import tpu as pltpu


def _lm_head_kernel(x_ref, w1_ref, b1_ref, gamma_ref, beta_ref, w2_ref,
                    o_ref, hn_ref, *, eps):
    # x_ref:     (tm, H)   input token tile
    # w1_ref:    (H, H)    dense weight (in, out)
    # b1_ref:    (1, H)    dense bias
    # gamma_ref: (1, H)    layernorm scale
    # beta_ref:  (1, H)    layernorm shift
    # w2_ref:    (H, tn)   decoder weight tile (in, out), no bias
    # o_ref:     (tm, tn)  output logits tile
    # hn_ref:    (tm, H)   scratch caching GELU+LayerNorm output across vocab
    #                      tiles, stored in the decoder-weight dtype.
    #
    # NOTE: the hn cache is only valid because the vocab axis (grid axis 1) is
    # the innermost, sequentially iterated ("arbitrary") axis.  Do NOT mark it
    # "parallel"/"core_parallel": a core starting at j != 0 would read
    # uninitialized scratch.

    # Compute dense -> GELU -> LayerNorm only once per row tile (first vocab tile).
    @pl.when(pl.program_id(1) == 0)
    def _():
        # dense: x @ W1 + b1 (MXU).  Native operand dtypes; f32 accumulation.
        h = jnp.dot(x_ref[...], w1_ref[...], preferred_element_type=jnp.float32)
        h = h + b1_ref[...].astype(jnp.float32)

        # exact GELU (erf form, matches torch.nn.functional.gelu default)
        h = 0.5 * h * (1.0 + lax.erf(h * (1.0 / math.sqrt(2.0))))

        # LayerNorm over last dim, biased variance (PyTorch semantics)
        mu = jnp.mean(h, axis=-1, keepdims=True)
        var = jnp.mean((h - mu) * (h - mu), axis=-1, keepdims=True)
        hn = (h - mu) * lax.rsqrt(var + eps)
        hn = hn * gamma_ref[...].astype(jnp.float32) + beta_ref[...].astype(jnp.float32)

        # Cache in decoder-weight dtype: one cast here instead of one per
        # vocab tile, and half the scratch/vld bytes when W2 is bf16.
        hn_ref[...] = hn.astype(hn_ref.dtype)

    # decoder tile: hn @ W2[:, j*tn:(j+1)*tn]  (MXU, f32 accumulation).
    o_ref[...] = jnp.dot(hn_ref[...], w2_ref[...],
                         preferred_element_type=jnp.float32).astype(o_ref.dtype)

    # TODO(synk): K-tile the x @ W1 dense matmul (or hoist dense+GELU+LN into a
    # separate small pallas_call) so a full (H, H) W1 block need not be
    # VMEM-resident for very large hidden sizes on v7x (64 MiB VMEM).
    # TODO(synk): for single-row-tile (decode) shapes on v7x, shard the vocab
    # axis across the two TensorCores (recomputing hn per core) instead of the
    # row axis, so both cores get work.


def _round_up(x, m):
    return ((x + m - 1) // m) * m


def _pick_vocab_tile(V, cap=2048, target=1024):
    """Largest multiple-of-128 divisor of V not exceeding `cap` — avoids ever
    padding (and thus copying) the (H, V) decoder weight.  Falls back to a
    padded `target` tile when V is not a multiple of 128."""
    if V % 128 == 0:
        best = 128
        for cand in range(128, min(V, cap) + 1, 128):
            if V % cand == 0:
                best = cand
        return best
    return min(target, _round_up(V, 128))


def _vmem_capacity_bytes():
    try:
        info = pltpu.get_tpu_info()
        cap = getattr(info, "vmem_capacity_bytes", None)
        if cap:
            return int(cap)
    except Exception:
        pass
    # Conservative fallback: v7x has 64 MiB per TensorCore.
    return 64 * 1024 * 1024


def sinhala_lm_head(hidden_states, w1, b1, gamma, beta, w2, *,
                    eps=1e-12, tm=None, tn=None, out_dtype=None):
    """hidden_states: (B, S, H); w1: (H, H); w2: (H, V) — both (in, out).

    Returns logits of shape (B, S, V) in `out_dtype` (defaults to w2.dtype).
    Pass bf16 W1/W2 for full MXU rate and halved weight streaming.
    """
    B, S, H = hidden_states.shape
    H2, V = w2.shape
    assert H2 == H
    M = B * S
    x2d = hidden_states.reshape(M, H)

    out_dtype = jnp.dtype(out_dtype) if out_dtype is not None else jnp.dtype(w2.dtype)

    # Row tile: multiple of 8 (sublane).  Default 512 keeps the decoder matmul
    # above the HBM roofline crossover on v6e/v7x; capped by (padded) M.
    if tm is None:
        tm = min(512, _round_up(M, 8))
    tm = max(8, (tm // 8) * 8)

    # Vocab tile: multiple of 128 (lane axis), ideally a divisor of V.
    if tn is None:
        tn = _pick_vocab_tile(V)
    tn = max(128, (tn // 128) * 128)

    # --- VMEM budgeting (cap by physical VMEM, shrink tiles if needed) ---
    x_sz = jnp.dtype(x2d.dtype).itemsize
    w1_sz = jnp.dtype(w1.dtype).itemsize
    w2_sz = jnp.dtype(w2.dtype).itemsize
    hn_sz = jnp.dtype(w2.dtype).itemsize
    out_sz = out_dtype.itemsize

    def _footprint(tm_, tn_):
        return (2 * tm_ * H * x_sz          # x tiles (double buffered)
                + 2 * H * H * w1_sz         # W1 (worst case: double buffered)
                + 2 * H * tn_ * w2_sz       # W2 vocab tiles (dominant stream)
                + 2 * tm_ * tn_ * out_sz    # output tiles
                + tm_ * H * hn_sz           # hn scratch (single buffer)
                + 8 * H * 4)                # bias / gamma / beta + slack

    cap = _vmem_capacity_bytes()
    budget = int(0.70 * cap)
    while _footprint(tm, tn) > budget and tm > 64:
        tm = max(64, (tm // 2 // 8) * 8)
    while _footprint(tm, tn) > budget and tn > 128:
        tn = max(128, (tn // 2 // 128) * 128)

    M_pad = _round_up(M, tm)
    V_pad = _round_up(V, tn)

    if M_pad != M:
        x2d = jnp.pad(x2d, ((0, M_pad - M), (0, 0)))
    # With tn chosen as a divisor of V this pad is a no-op (no HBM copy of W2).
    w2p = jnp.pad(w2, ((0, 0), (0, V_pad - V))) if V_pad != V else w2

    b1_2d = b1.reshape(1, H)
    gamma_2d = gamma.reshape(1, H)
    beta_2d = beta.reshape(1, H)

    grid = (M_pad // tm, V_pad // tn)

    est = _footprint(tm, tn)
    vmem_limit = int(min(int(0.75 * cap), max(32 * 1024 * 1024, 2 * est)))

    kernel = lambda *refs: _lm_head_kernel(*refs, eps=eps)

    def _call(single_buffer_consts):
        # Constant-index operands never change block index -> single-buffer
        # them to free VMEM (matters on v7x's 64 MiB budget).
        const_kw = dict(pipeline_mode=pl.Buffered(1)) if single_buffer_consts else {}
        grid_spec = pltpu.PrefetchScalarGridSpec(
            num_scalar_prefetch=0,
            grid=grid,
            in_specs=[
                pl.BlockSpec((tm, H), lambda i, j: (i, 0)),               # x row tile
                pl.BlockSpec((H, H), lambda i, j: (0, 0), **const_kw),    # dense weight
                pl.BlockSpec((1, H), lambda i, j: (0, 0), **const_kw),    # dense bias
                pl.BlockSpec((1, H), lambda i, j: (0, 0), **const_kw),    # ln gamma
                pl.BlockSpec((1, H), lambda i, j: (0, 0), **const_kw),    # ln beta
                pl.BlockSpec((H, tn), lambda i, j: (0, j)),               # decoder weight tile
            ],
            out_specs=pl.BlockSpec((tm, tn), lambda i, j: (i, j)),
            scratch_shapes=[pltpu.VMEM((tm, H), w2p.dtype)],              # cached hn
        )
        return pl.pallas_call(
            kernel,
            out_shape=jax.ShapeDtypeStruct((M_pad, V_pad), out_dtype),
            grid_spec=grid_spec,
            compiler_params=pltpu.CompilerParams(
                # Vocab axis MUST stay "arbitrary" (hn cache invariant).
                dimension_semantics=("parallel", "arbitrary"),
                vmem_limit_bytes=vmem_limit,
            ),
        )(x2d, w1, b1_2d, gamma_2d, beta_2d, w2p)

    try:
        out2d = _call(True)
    except Exception:
        # pipeline_mode=pl.Buffered(1) unsupported in this JAX build; fall back
        # to default double-buffering of the constant operands.
        out2d = _call(False)

    if M_pad != M or V_pad != V:
        out2d = out2d[:M, :V]
    return out2d.reshape(B, S, V)


def _reference(hidden_states, w1, b1, gamma, beta, w2, eps):
    x = hidden_states.astype(jnp.float32)
    h = x @ w1.astype(jnp.float32) + b1.astype(jnp.float32)
    h = 0.5 * h * (1.0 + lax.erf(h / jnp.sqrt(2.0)))
    mu = jnp.mean(h, axis=-1, keepdims=True)
    var = jnp.mean((h - mu) ** 2, axis=-1, keepdims=True)
    hn = (h - mu) / jnp.sqrt(var + eps)
    hn = hn * gamma.astype(jnp.float32) + beta.astype(jnp.float32)
    return hn @ w2.astype(jnp.float32)


if __name__ == "__main__":
    # Small config consistent with the module (hidden_size, vocab_size scaled down).
    B, S, H, V = 2, 8, 128, 512
    eps = 1e-12

    key = jax.random.PRNGKey(0)
    kx, kw1, kb1, kw2 = jax.random.split(key, 4)

    x = jax.random.normal(kx, (B, S, H), dtype=jnp.float32)

    init_range = 0.02
    w1 = init_range * jax.random.normal(kw1, (H, H), dtype=jnp.float32)   # (in, out)
    b1 = 0.01 * jax.random.normal(kb1, (H,), dtype=jnp.float32)
    gamma = jnp.ones((H,), dtype=jnp.float32)
    beta = jnp.zeros((H,), dtype=jnp.float32)
    w2 = init_range * jax.random.normal(kw2, (H, V), dtype=jnp.float32)   # (in, out), no bias

    ref = _reference(x, w1, b1, gamma, beta, w2, eps).reshape(B, S, V)

    # Multi-tile path: 2 row tiles x 2 vocab tiles — exercises the cached-hn
    # scratch and the vocab streaming axis.
    logits = sinhala_lm_head(x, w1, b1, gamma, beta, w2, eps=eps, tm=8, tn=256)
    jax.block_until_ready(logits)
    assert logits.shape == (B, S, V)
    assert jnp.max(jnp.abs(logits.astype(jnp.float32) - ref)) < 1e-3, \
        "mismatch vs reference (tiled path)"

    # Default tiling path (tile sizes chosen automatically, f32 weights).
    logits2 = sinhala_lm_head(x, w1, b1, gamma, beta, w2, eps=eps)
    jax.block_until_ready(logits2)
    assert jnp.max(jnp.abs(logits2.astype(jnp.float32) - ref)) < 1e-3, \
        "mismatch vs reference (default path)"

    # Production-style bf16 weight path: bf16 hn scratch + bf16 logits.
    w1_bf16 = w1.astype(jnp.bfloat16)
    w2_bf16 = w2.astype(jnp.bfloat16)
    logits3 = sinhala_lm_head(x, w1_bf16, b1, gamma, beta, w2_bf16, eps=eps)
    jax.block_until_ready(logits3)
    assert logits3.shape == (B, S, V)
    assert logits3.dtype == jnp.bfloat16
    assert jnp.max(jnp.abs(logits3.astype(jnp.float32) - ref)) < 1e-1, \
        "mismatch vs reference (bf16 path)"

    print("KERNEL_OK")
</pallas_src>

<mosaic_0001>
module attributes {stable_mosaic.version = 11 : i64} {
  func.func @_lambda_(%arg0: i32, %arg1: i32, %arg2: memref<8x128xf32, #tpu.memory_space<vmem>>, %arg3: memref<128x128xf32, #tpu.memory_space<vmem>>, %arg4: memref<1x128xf32, #tpu.memory_space<vmem>>, %arg5: memref<1x128xf32, #tpu.memory_space<vmem>>, %arg6: memref<1x128xf32, #tpu.memory_space<vmem>>, %arg7: memref<128x256xf32, #tpu.memory_space<vmem>>, %arg8: memref<8x256xf32, #tpu.memory_space<vmem>>, %arg9: memref<8x128xf32, #tpu.memory_space<vmem>>) attributes {dimension_semantics = [#tpu.dimension_semantics<parallel>, #tpu.dimension_semantics<arbitrary>], iteration_bounds = array<i64: 2, 2>, scalar_prefetch = 0 : i64, scratch_operands = 1 : i64, tpu.core_type = #tpu.core_type<tc>, window_params = [{transform_indices = @transform_0, window_bounds = array<i64: 8, 128>}, {pipeline_mode = #tpu.pipeline_mode<synchronous>, transform_indices = @transform_1, window_bounds = array<i64: 128, 128>}, {pipeline_mode = #tpu.pipeline_mode<synchronous>, transform_indices = @transform_2, window_bounds = array<i64: 1, 128>}, {pipeline_mode = #tpu.pipeline_mode<synchronous>, transform_indices = @transform_3, window_bounds = array<i64: 1, 128>}, {pipeline_mode = #tpu.pipeline_mode<synchronous>, transform_indices = @transform_4, window_bounds = array<i64: 1, 128>}, {transform_indices = @transform_5, window_bounds = array<i64: 128, 256>}, {transform_indices = @transform_6, window_bounds = array<i64: 8, 256>}]} {
    %c0_i32 = arith.constant 0 : i32
    %0 = arith.cmpi eq, %arg1, %c0_i32 : i32
    %1 = arith.extui %0 : i1 to i32
    %c0_i32_0 = arith.constant 0 : i32
    %2 = arith.cmpi ne, %1, %c0_i32_0 : i32
    scf.if %2 {
      %c0_6 = arith.constant 0 : index
      %c0_7 = arith.constant 0 : index
      %7 = vector.load %arg2[%c0_6, %c0_7] : memref<8x128xf32, #tpu.memory_space<vmem>>, vector<8x128xf32>
      %c0_8 = arith.constant 0 : index
      %c0_9 = arith.constant 0 : index
      %8 = vector.load %arg3[%c0_8, %c0_9] : memref<128x128xf32, #tpu.memory_space<vmem>>, vector<128x128xf32>
      %cst_10 = arith.constant dense<0.000000e+00> : vector<8x128xf32>
      %9 = tpu.matmul %7, %8, %cst_10 {dimension_numbers = #tpu.dot_dimension_numbers<[1], [0], [0], [1], [0, 0, 1, 1], [], []>} : vector<8x128xf32>, vector<128x128xf32>, vector<8x128xf32> -> vector<8x128xf32>
      %c0_11 = arith.constant 0 : index
      %c0_12 = arith.constant 0 : index
      %10 = vector.load %arg4[%c0_11, %c0_12] : memref<1x128xf32, #tpu.memory_space<vmem>>, vector<1x128xf32>
      %11 = vector.broadcast %10 : vector<1x128xf32> to vector<8x128xf32>
      %12 = arith.addf %9, %11 : vector<8x128xf32>
      %cst_13 = arith.constant 5.000000e-01 : f32
      %13 = vector.broadcast %cst_13 : f32 to vector<8x128xf32>
      %14 = arith.mulf %13, %12 : vector<8x128xf32>
      %cst_14 = arith.constant 0.707106769 : f32
      %15 = vector.broadcast %cst_14 : f32 to vector<8x128xf32>
      %16 = arith.mulf %12, %15 : vector<8x128xf32>
      %17 = math.erf %16 : vector<8x128xf32>
      %cst_15 = arith.constant 1.000000e+00 : f32
      %18 = vector.broadcast %cst_15 : f32 to vector<8x128xf32>
      %19 = arith.addf %18, %17 : vector<8x128xf32>
      %20 = arith.mulf %14, %19 : vector<8x128xf32>
      %cst_16 = arith.constant dense<0.000000e+00> : vector<8xf32>
      %21 = vector.multi_reduction <add>, %20, %cst_16 [1] : vector<8x128xf32> to vector<8xf32>
      %22 = vector.shape_cast %21 : vector<8xf32> to vector<8x1xf32>
      %cst_17 = arith.constant 1.280000e+02 : f32
      %23 = vector.broadcast %cst_17 : f32 to vector<8x1xf32>
      %24 = arith.divf %22, %23 : vector<8x1xf32>
      %25 = vector.broadcast %24 : vector<8x1xf32> to vector<8x128xf32>
      %26 = arith.subf %20, %25 : vector<8x128xf32>
      %27 = vector.broadcast %24 : vector<8x1xf32> to vector<8x128xf32>
      %28 = arith.subf %20, %27 : vector<8x128xf32>
      %29 = arith.mulf %26, %28 : vector<8x128xf32>
      %cst_18 = arith.constant dense<0.000000e+00> : vector<8xf32>
      %30 = vector.multi_reduction <add>, %29, %cst_18 [1] : vector<8x128xf32> to vector<8xf32>
      %31 = vector.shape_cast %30 : vector<8xf32> to vector<8x1xf32>
      %cst_19 = arith.constant 1.280000e+02 : f32
      %32 = vector.broadcast %cst_19 : f32 to vector<8x1xf32>
      %33 = arith.divf %31, %32 : vector<8x1xf32>
      %34 = vector.broadcast %24 : vector<8x1xf32> to vector<8x128xf32>
      %35 = arith.subf %20, %34 : vector<8x128xf32>
      %cst_20 = arith.constant 9.99999996E-13 : f32
      %36 = vector.broadcast %cst_20 : f32 to vector<8x1xf32>
      %37 = arith.addf %33, %36 : vector<8x1xf32>
      %38 = math.rsqrt %37 : vector<8x1xf32>
      %39 = vector.broadcast %38 : vector<8x1xf32> to vector<8x128xf32>
      %40 = arith.mulf %35, %39 : vector<8x128xf32>
      %c0_21 = arith.constant 0 : index
      %c0_22 = arith.constant 0 : index
      %41 = vector.load %arg5[%c0_21, %c0_22] : memref<1x128xf32, #tpu.memory_space<vmem>>, vector<1x128xf32>
      %42 = vector.broadcast %41 : vector<1x128xf32> to vector<8x128xf32>
      %43 = arith.mulf %40, %42 : vector<8x128xf32>
      %c0_23 = arith.constant 0 : index
      %c0_24 = arith.constant 0 : index
      %44 = vector.load %arg6[%c0_23, %c0_24] : memref<1x128xf32, #tpu.memory_space<vmem>>, vector<1x128xf32>
      %45 = vector.broadcast %44 : vector<1x128xf32> to vector<8x128xf32>
      %46 = arith.addf %43, %45 : vector<8x128xf32>
      %c0_25 = arith.constant 0 : index
      %c0_26 = arith.constant 0 : index
      %47 = vector.load %arg9[%c0_25, %c0_26] : memref<8x128xf32, #tpu.memory_space<vmem>>, vector<8x128xf32>
      tpu.vector_store %arg9[%c0_25, %c0_26], %46 {strides = array<i32>} : memref<8x128xf32, #tpu.memory_space<vmem>>, vector<8x128xf32>,
    } else {
    }
    %c0 = arith.constant 0 : index
    %c0_1 = arith.constant 0 : index
    %3 = vector.load %arg9[%c0, %c0_1] : memref<8x128xf32, #tpu.memory_space<vmem>>, vector<8x128xf32>
    %c0_2 = arith.constant 0 : index
    %c0_3 = arith.constant 0 : index
    %4 = vector.load %arg7[%c0_2, %c0_3] : memref<128x256xf32, #tpu.memory_space<vmem>>, vector<128x256xf32>
    %cst = arith.constant dense<0.000000e+00> : vector<8x256xf32>
    %5 = tpu.matmul %3, %4, %cst {dimension_numbers = #tpu.dot_dimension_numbers<[1], [0], [0], [1], [0, 0, 1, 1], [], []>} : vector<8x128xf32>, vector<128x256xf32>, vector<8x256xf32> -> vector<8x256xf32>
    %c0_4 = arith.constant 0 : index
    %c0_5 = arith.constant 0 : index
    %6 = vector.load %arg8[%c0_4, %c0_5] : memref<8x256xf32, #tpu.memory_space<vmem>>, vector<8x256xf32>
    tpu.vector_store %arg8[%c0_4, %c0_5], %5 {strides = array<i32>} : memref<8x256xf32, #tpu.memory_space<vmem>>, vector<8x256xf32>,
    return
  }
  func.func @transform_0(%arg0: i32, %arg1: i32) -> (i32, i32) {
    %c0_i32 = arith.constant 0 : i32
    %c0_i32_0 = arith.constant 0 : i32
    return %arg0, %c0_i32 : i32, i32
  }
  func.func @transform_1(%arg0: i32, %arg1: i32) -> (i32, i32) {
    %c0_i32 = arith.constant 0 : i32
    %c0_i32_0 = arith.constant 0 : i32
    %c0_i32_1 = arith.constant 0 : i32
    return %c0_i32, %c0_i32_0 : i32, i32
  }
  func.func @transform_2(%arg0: i32, %arg1: i32) -> (i32, i32) {
    %c0_i32 = arith.constant 0 : i32
    %c0_i32_0 = arith.constant 0 : i32
    %c0_i32_1 = arith.constant 0 : i32
    return %c0_i32, %c0_i32_0 : i32, i32
  }
  func.func @transform_3(%arg0: i32, %arg1: i32) -> (i32, i32) {
    %c0_i32 = arith.constant 0 : i32
    %c0_i32_0 = arith.constant 0 : i32
    %c0_i32_1 = arith.constant 0 : i32
    return %c0_i32, %c0_i32_0 : i32, i32
  }
  func.func @transform_4(%arg0: i32, %arg1: i32) -> (i32, i32) {
    %c0_i32 = arith.constant 0 : i32
    %c0_i32_0 = arith.constant 0 : i32
    %c0_i32_1 = arith.constant 0 : i32
    return %c0_i32, %c0_i32_0 : i32, i32
  }
  func.func @transform_5(%arg0: i32, %arg1: i32) -> (i32, i32) {
    %c0_i32 = arith.constant 0 : i32
    %c0_i32_0 = arith.constant 0 : i32
    return %c0_i32, %arg1 : i32, i32
  }
  func.func @transform_6(%arg0: i32, %arg1: i32) -> (i32, i32) {
    %c0_i32 = arith.constant 0 : i32
    return %arg0, %arg1 : i32, i32
  }
}

module attributes {stable_mosaic.version = 11 : i64} {
  func.func @_lambda_(%arg0: i32, %arg1: i32, %arg2: memref<8x128xf32, #tpu.memory_space<vmem>>, %arg3: memref<128x128xf32, #tpu.memory_space<vmem>>, %arg4: memref<1x128xf32, #tpu.memory_space<vmem>>, %arg5: memref<1x128xf32, #tpu.memory_space<vmem>>, %arg6: memref<1x128xf32, #tpu.memory_space<vmem>>, %arg7: memref<128x256xf32, #tpu.memory_space<vmem>>, %arg8: memref<8x256xf32, #tpu.memory_space<vmem>>, %arg9: memref<8x128xf32, #tpu.memory_space<vmem>>) attributes {dimension_semantics = [#tpu.dimension_semantics<parallel>, #tpu.dimension_semantics<arbitrary>], iteration_bounds = array<i64: 2, 2>, scalar_prefetch = 0 : i64, scratch_operands = 1 : i64, tpu.core_type = #tpu.core_type<tc>, window_params = [{transform_indices = @transform_0, window_bounds = array<i64: 8, 128>}, {pipeline_mode = #tpu.pipeline_mode<synchronous>, transform_indices = @transform_1, window_bounds = array<i64: 128, 128>}, {pipeline_mode = #tpu.pipeline_mode<synchronous>, transform_indices = @transform_2, window_bounds = array<i64: 1, 128>}, {pipeline_mode = #tpu.pipeline_mode<synchronous>, transform_indices = @transform_3, window_bounds = array<i64: 1, 128>}, {pipeline_mode = #tpu.pipeline_mode<synchronous>, transform_indices = @transform_4, window_bounds = array<i64: 1, 128>}, {transform_indices = @transform_5, window_bounds = array<i64: 128, 256>}, {transform_indices = @transform_6, window_bounds = array<i64: 8, 256>}]} {
    %c0_i32 = arith.constant 0 : i32
    %0 = arith.cmpi eq, %arg1, %c0_i32 : i32
    %1 = arith.extui %0 : i1 to i32
    %c0_i32_0 = arith.constant 0 : i32
    %2 = arith.cmpi ne, %1, %c0_i32_0 : i32
    scf.if %2 {
      %c0_6 = arith.constant 0 : index
      %c0_7 = arith.constant 0 : index
      %7 = vector.load %arg2[%c0_6, %c0_7] : memref<8x128xf32, #tpu.memory_space<vmem>>, vector<8x128xf32>
      %c0_8 = arith.constant 0 : index
      %c0_9 = arith.constant 0 : index
      %8 = vector.load %arg3[%c0_8, %c0_9] : memref<128x128xf32, #tpu.memory_space<vmem>>, vector<128x128xf32>
      %cst_10 = arith.constant dense<0.000000e+00> : vector<8x128xf32>
      %9 = tpu.matmul %7, %8, %cst_10 {dimension_numbers = #tpu.dot_dimension_numbers<[1], [0], [0], [1], [0, 0, 1, 1], [], []>} : vector<8x128xf32>, vector<128x128xf32>, vector<8x128xf32> -> vector<8x128xf32>
      %c0_11 = arith.constant 0 : index
      %c0_12 = arith.constant 0 : index
      %10 = vector.load %arg4[%c0_11, %c0_12] : memref<1x128xf32, #tpu.memory_space<vmem>>, vector<1x128xf32>
      %11 = vector.broadcast %10 : vector<1x128xf32> to vector<8x128xf32>
      %12 = arith.addf %9, %11 : vector<8x128xf32>
      %cst_13 = arith.constant 5.000000e-01 : f32
      %13 = vector.broadcast %cst_13 : f32 to vector<8x128xf32>
      %14 = arith.mulf %13, %12 : vector<8x128xf32>
      %cst_14 = arith.constant 0.707106769 : f32
      %15 = vector.broadcast %cst_14 : f32 to vector<8x128xf32>
      %16 = arith.mulf %12, %15 : vector<8x128xf32>
      %17 = math.erf %16 : vector<8x128xf32>
      %cst_15 = arith.constant 1.000000e+00 : f32
      %18 = vector.broadcast %cst_15 : f32 to vector<8x128xf32>
      %19 = arith.addf %18, %17 : vector<8x128xf32>
      %20 = arith.mulf %14, %19 : vector<8x128xf32>
      %cst_16 = arith.constant dense<0.000000e+00> : vector<8xf32>
      %21 = vector.multi_reduction <add>, %20, %cst_16 [1] : vector<8x128xf32> to vector<8xf32>
      %22 = vector.shape_cast %21 : vector<8xf32> to vector<8x1xf32>
      %cst_17 = arith.constant 1.280000e+02 : f32
      %23 = vector.broadcast %cst_17 : f32 to vector<8x1xf32>
      %24 = arith.divf %22, %23 : vector<8x1xf32>
      %25 = vector.broadcast %24 : vector<8x1xf32> to vector<8x128xf32>
      %26 = arith.subf %20, %25 : vector<8x128xf32>
      %27 = vector.broadcast %24 : vector<8x1xf32> to vector<8x128xf32>
      %28 = arith.subf %20, %27 : vector<8x128xf32>
      %29 = arith.mulf %26, %28 : vector<8x128xf32>
      %cst_18 = arith.constant dense<0.000000e+00> : vector<8xf32>
      %30 = vector.multi_reduction <add>, %29, %cst_18 [1] : vector<8x128xf32> to vector<8xf32>
      %31 = vector.shape_cast %30 : vector<8xf32> to vector<8x1xf32>
      %cst_19 = arith.constant 1.280000e+02 : f32
      %32 = vector.broadcast %cst_19 : f32 to vector<8x1xf32>
      %33 = arith.divf %31, %32 : vector<8x1xf32>
      %34 = vector.broadcast %24 : vector<8x1xf32> to vector<8x128xf32>
      %35 = arith.subf %20, %34 : vector<8x128xf32>
      %cst_20 = arith.constant 9.99999996E-13 : f32
      %36 = vector.broadcast %cst_20 : f32 to vector<8x1xf32>
      %37 = arith.addf %33, %36 : vector<8x1xf32>
      %38 = math.rsqrt %37 : vector<8x1xf32>
      %39 = vector.broadcast %38 : vector<8x1xf32> to vector<8x128xf32>
      %40 = arith.mulf %35, %39 : vector<8x128xf32>
      %c0_21 = arith.constant 0 : index
      %c0_22 = arith.constant 0 : index
      %41 = vector.load %arg5[%c0_21, %c0_22] : memref<1x128xf32, #tpu.memory_space<vmem>>, vector<1x128xf32>
      %42 = vector.broadcast %41 : vector<1x128xf32> to vector<8x128xf32>
      %43 = arith.mulf %40, %42 : vector<8x128xf32>
      %c0_23 = arith.constant 0 : index
      %c0_24 = arith.constant 0 : index
      %44 = vector.load %arg6[%c0_23, %c0_24] : memref<1x128xf32, #tpu.memory_space<vmem>>, vector<1x128xf32>
      %45 = vector.broadcast %44 : vector<1x128xf32> to vector<8x128xf32>
      %46 = arith.addf %43, %45 : vector<8x128xf32>
      %c0_25 = arith.constant 0 : index
      %c0_26 = arith.constant 0 : index
      %47 = vector.load %arg9[%c0_25, %c0_26] : memref<8x128xf32, #tpu.memory_space<vmem>>, vector<8x128xf32>
      tpu.vector_store %arg9[%c0_25, %c0_26], %46 {strides = array<i32>} : memref<8x128xf32, #tpu.memory_space<vmem>>, vector<8x128xf32>,
    } else {
    }
    %c0 = arith.constant 0 : index
    %c0_1 = arith.constant 0 : index
    %3 = vector.load %arg9[%c0, %c0_1] : memref<8x128xf32, #tpu.memory_space<vmem>>, vector<8x128xf32>
    %c0_2 = arith.constant 0 : index
    %c0_3 = arith.constant 0 : index
    %4 = vector.load %arg7[%c0_2, %c0_3] : memref<128x256xf32, #tpu.memory_space<vmem>>, vector<128x256xf32>
    %cst = arith.constant dense<0.000000e+00> : vector<8x256xf32>
    %5 = tpu.matmul %3, %4, %cst {dimension_numbers = #tpu.dot_dimension_numbers<[1], [0], [0], [1], [0, 0, 1, 1], [], []>} : vector<8x128xf32>, vector<128x256xf32>, vector<8x256xf32> -> vector<8x256xf32>
    %c0_4 = arith.constant 0 : index
    %c0_5 = arith.constant 0 : index
    %6 = vector.load %arg8[%c0_4, %c0_5] : memref<8x256xf32, #tpu.memory_space<vmem>>, vector<8x256xf32>
    tpu.vector_store %arg8[%c0_4, %c0_5], %5 {strides = array<i32>} : memref<8x256xf32, #tpu.memory_space<vmem>>, vector<8x256xf32>,
    return
  }
  func.func @transform_0(%arg0: i32, %arg1: i32) -> (i32, i32) {
    %c0_i32 = arith.constant 0 : i32
    %c0_i32_0 = arith.constant 0 : i32
    return %arg0, %c0_i32 : i32, i32
  }
  func.func @transform_1(%arg0: i32, %arg1: i32) -> (i32, i32) {
    %c0_i32 = arith.constant 0 : i32
    %c0_i32_0 = arith.constant 0 : i32
    %c0_i32_1 = arith.constant 0 : i32
    return %c0_i32, %c0_i32_0 : i32, i32
  }
  func.func @transform_2(%arg0: i32, %arg1: i32) -> (i32, i32) {
    %c0_i32 = arith.constant 0 : i32
    %c0_i32_0 = arith.constant 0 : i32
    %c0_i32_1 = arith.constant 0 : i32
    return %c0_i32, %c0_i32_0 : i32, i32
  }
  func.func @transform_3(%arg0: i32, %arg1: i32) -> (i32, i32) {
    %c0_i32 = arith.constant 0 : i32
    %c0_i32_0 = arith.constant 0 : i32
    %c0_i32_1 = arith.constant 0 : i32
    return %c0_i32, %c0_i32_0 : i32, i32
  }
  func.func @transform_4(%arg0: i32, %arg1: i32) -> (i32, i32) {
    %c0_i32 = arith.constant 0 : i32
    %c0_i32_0 = arith.constant 0 : i32
    %c0_i32_1 = arith.constant 0 : i32
    return %c0_i32, %c0_i32_0 : i32, i32
  }
  func.func @transform_5(%arg0: i32, %arg1: i32) -> (i32, i32) {
    %c0_i32 = arith.constant 0 : i32
    %c0_i32_0 = arith.constant 0 : i32
    return %c0_i32, %arg1 : i32, i32
  }
  func.func @transform_6(%arg0: i32, %arg1: i32) -> (i32, i32) {
    %c0_i32 = arith.constant 0 : i32
    return %arg0, %arg1 : i32, i32
  }
}

</mosaic_0001>

<llo_original>
// kernel: tpu_custom_call.1
$region0: #{tpu_custom_call.1}
  #allocation0 [shape = 'u32[]', space=smem, size = 0x4, offset = 0x4, fixed_abs, tag = 'smem constant byte address 0x4 - core index']
  #allocation1 [shape = 'u32[144,128]{1,0:T(1,128)}', space=vmem, size = 0x12000, scoped, tag = 'internal scratch']
  #allocation2 [shape = 'f32[8,128]{1,0:T(8,128)}', space=vmem, size = 0x1000, scoped, tag = 'scratch operand']
  %s0 = inlined_call_operand.hbm [shape: f32[16,128], index: 0, kind: input, shape index: {}]
  %s1 = inlined_call_operand.hbm [shape: f32[128,128], index: 1, kind: input, shape index: {}]
  %s2 = inlined_call_operand.vmem [shape: f32[1,128], index: 2, kind: input, shape index: {}]
  %s3 = inlined_call_operand.vmem [shape: f32[1,128], index: 3, kind: input, shape index: {}]
  %s4 = inlined_call_operand.vmem [shape: f32[1,128], index: 4, kind: input, shape index: {}]
  %s5 = inlined_call_operand.hbm [shape: f32[128,512], index: 5, kind: input, shape index: {}]
  %s6 = inlined_call_operand.hbm [shape: f32[16,512], index: 6, kind: output, shape index: {}]
  %s7 = sld [smem:[#allocation0]]
  $region73: #{tpu_custom_call.1} parent=0
    _
  %s9 = ssub.s32 1, %s7
  %s10 = scalar_select 0, %s9, %s7
  $region1: #{tpu_custom_call.1} parent=0
    #allocation3 [shape = 'u8[8192]{0}', space=vmem, size = 0x2000, scoped, tag = 'input window, operand 0']
    #allocation4 [shape = 's32[2]{0}', space=sflag, size = 0x8, scoped, tag = 'scoped memory for tpu_custom_call.1']
    #allocation5 [shape = 's32[2]{0}', space=sflag, size = 0x8, scoped, tag = 'scoped memory for tpu_custom_call.1']
    #allocation6 [shape = 'u8[65536]{0}', space=vmem, size = 0x10000, scoped, tag = 'input window, operand 1, single buffered']
    #allocation7 [shape = 's32[1]{0}', space=sflag, size = 0x4, scoped, tag = 'scoped memory for tpu_custom_call.1']
    #allocation8 [shape = 'u8[262144]{0}', space=vmem, size = 0x40000, scoped, tag = 'input window, operand 5']
    #allocation9 [shape = 'u8[16384]{0}', space=vmem, size = 0x4000, scoped, tag = 'output window, operand 0']
    %11 = vsyncpa [#allocation4], 0
    %s12 = scalar_lea.sflag [#allocation4], 1
    %13 = vsyncpa %s12, 0
    %14 = vsyncpa [#allocation7], 0
    %15 = vsyncpa [#allocation5], 0
    %s16 = scalar_lea.sflag [#allocation5], 1
    %17 = vsyncpa %s16, 0
    loop: start=0, step=1, limit=6
    $region2: #{tpu_custom_call.1} parent=1 // loop_pre_header
      _
    $region3: #{tpu_custom_call.1} parent=1 // loop_header
      %s19 = sphi 0, %s23
      %p20 = scmp.ge.s32.totalorder %s19, 6
      %s26 = sphi 0, %s38
      %s27 = sphi 0, %s34
      %s28 = sphi 0, %s26
      %s29 = sphi 0, %s27
      %s30 = sphi 0, %s28
      %s31 = sphi 0, %s29
      %s41 = sphi 0, %s43
      %s44 = sphi 0, %s41
      %s45 = sphi 0, %s44
      %s61 = sphi 0, %s45
      %s65 = sphi 0, %s65
      %s67 = sphi 0, %s65
      %s68 = sphi 0, %s67
      %s82 = sphi 0, %s68
      %s86 = sphi 0, %s86
      %s88 = sphi 0, %s86
      %s89 = sphi 0, %s88
      %s103 = sphi 0, %s89
      %s107 = sphi 0, %s107
      %s109 = sphi 0, %s107
      %s110 = sphi 0, %s109
      %s124 = sphi 0, %s110
      %s128 = sphi 0, %s128
      %s130 = sphi 0, %s128
      %s131 = sphi 0, %s130
      %s145 = sphi 0, %s131
      %s151 = sphi 0, %s153
      %s154 = sphi 0, %s151
      %s155 = sphi 0, %s154
      %s171 = sphi 0, %s155
      %s179 = sphi 0, %s181
      %s182 = sphi 0, %s179
      %s183 = sphi 0, %s182
      %s199 = sphi 0, %s183
    $region4: #{tpu_custom_call.1} parent=1 // loop_header_branch
      %22 = sbr.rel (%p20) target = $region8
    $region5: #{tpu_custom_call.1} parent=1 // loop_body
      %s24 = ssub.s32 %s19, 1
      %s25 = ssub.s32 %s19, 2
      %s32 = sadd.s32 1, %s27
      %p33 = scmp.ge.s32.totalorder %s32, 2
      %s34 = scalar_select %p33, 0, %s32
      %s35 = sadd.s32 1, %s26
      %s36 = scalar_select %p33, %s35, %s26
      %p37 = scmp.ge.s32.totalorder %s36, 2
      %s38 = scalar_select %p37, 0, %s36
      %s39 = ssub.s32 %s26, %s38
      %p40 = scmp.eq.s32.totalorder %s39, 0
      %s42 = sadd.s32 %s41, 1
      %s43 = scalar_select %p40, %s41, %s42
      %p46 = pneg %p40
      %p47 = scmp.eq.s32.totalorder %s19, 3
      %p48 = por %p46, %p47
      %p49 = scmp.ne.s32.totalorder %s41, %s44
      %p50 = scmp.eq.s32.totalorder %s19, 0
      %p51 = por %p49, %p50
      %p52 = scmp.ne.s32.totalorder %s41, %s44
      %p53 = scmp.eq.s32.totalorder %s24, 3
      %p54 = por %p52, %p53
      %p55 = scmp.ne.s32.totalorder %s44, %s45
      %p56 = scmp.eq.s32.totalorder %s24, 0
      %p57 = por %p55, %p56
      %p58 = scmp.ne.s32.totalorder %s44, %s45
      %p59 = scmp.eq.s32.totalorder %s25, 3
      %p60 = por %p58, %p59
      %p62 = scmp.ne.s32.totalorder %s45, %s61
      %p63 = scmp.eq.s32.totalorder %s25, 0
      %p64 = por %p62, %p63
      %s66 = sadd.s32 %s65, 1
      %p69 = scmp.eq.s32.totalorder %s19, 3
      %p70 = scmp.ne.s32.totalorder %s65, %s67
      %p71 = scmp.eq.s32.totalorder %s19, 0
      %p72 = por %p70, %p71
      %p73 = scmp.ne.s32.totalorder %s65, %s67
      %p74 = scmp.eq.s32.totalorder %s24, 3
      %p75 = por %p73, %p74
      %p76 = scmp.ne.s32.totalorder %s67, %s68
      %p77 = scmp.eq.s32.totalorder %s24, 0
      %p78 = por %p76, %p77
      %p79 = scmp.ne.s32.totalorder %s67, %s68
      %p80 = scmp.eq.s32.totalorder %s25, 3
      %p81 = por %p79, %p80
      %p83 = scmp.ne.s32.totalorder %s68, %s82
      %p84 = scmp.eq.s32.totalorder %s25, 0
      %p85 = por %p83, %p84
      %s87 = sadd.s32 %s86, 1
      %p90 = scmp.eq.s32.totalorder %s19, 3
      %p91 = scmp.ne.s32.totalorder %s86, %s88
      %p92 = scmp.eq.s32.totalorder %s19, 0
      %p93 = por %p91, %p92
      %p94 = scmp.ne.s32.totalorder %s86, %s88
      %p95 = scmp.eq.s32.totalorder %s24, 3
      %p96 = por %p94, %p95
      %p97 = scmp.ne.s32.totalorder %s88, %s89
      %p98 = scmp.eq.s32.totalorder %s24, 0
      %p99 = por %p97, %p98
      %p100 = scmp.ne.s32.totalorder %s88, %s89
      %p101 = scmp.eq.s32.totalorder %s25, 3
      %p102 = por %p100, %p101
      %p104 = scmp.ne.s32.totalorder %s89, %s103
      %p105 = scmp.eq.s32.totalorder %s25, 0
      %p106 = por %p104, %p105
      %s108 = sadd.s32 %s107, 1
      %p111 = scmp.eq.s32.totalorder %s19, 3
      %p112 = scmp.ne.s32.totalorder %s107, %s109
      %p113 = scmp.eq.s32.totalorder %s19, 0
      %p114 = por %p112, %p113
      %p115 = scmp.ne.s32.totalorder %s107, %s109
      %p116 = scmp.eq.s32.totalorder %s24, 3
      %p117 = por %p115, %p116
      %p118 = scmp.ne.s32.totalorder %s109, %s110
      %p119 = scmp.eq.s32.totalorder %s24, 0
      %p120 = por %p118, %p119
      %p121 = scmp.ne.s32.totalorder %s109, %s110
      %p122 = scmp.eq.s32.totalorder %s25, 3
      %p123 = por %p121, %p122
      %p125 = scmp.ne.s32.totalorder %s110, %s124
      %p126 = scmp.eq.s32.totalorder %s25, 0
      %p127 = por %p125, %p126
      %s129 = sadd.s32 %s128, 1
      %p132 = scmp.eq.s32.totalorder %s19, 3
      %p133 = scmp.ne.s32.totalorder %s128, %s130
      %p134 = scmp.eq.s32.totalorder %s19, 0
      %p135 = por %p133, %p134
      %p136 = scmp.ne.s32.totalorder %s128, %s130
      %p137 = scmp.eq.s32.totalorder %s24, 3
      %p138 = por %p136, %p137
      %p139 = scmp.ne.s32.totalorder %s130, %s131
      %p140 = scmp.eq.s32.totalorder %s24, 0
      %p141 = por %p139, %p140
      %p142 = scmp.ne.s32.totalorder %s130, %s131
      %p143 = scmp.eq.s32.totalorder %s25, 3
      %p144 = por %p142, %p143
      %p146 = scmp.ne.s32.totalorder %s131, %s145
      %p147 = scmp.eq.s32.totalorder %s25, 0
      %p148 = por %p146, %p147
      %s149 = ssub.s32 %s27, %s34
      %p150 = scmp.eq.s32.totalorder %s149, 0
      %s152 = sadd.s32 %s151, 1
      %s153 = scalar_select %p150, %s151, %s152
      %p156 = pneg %p150
      %p157 = scmp.eq.s32.totalorder %s19, 3
      %p158 = por %p156, %p157
      %p159 = scmp.ne.s32.totalorder %s151, %s154
      %p160 = scmp.eq.s32.totalorder %s19, 0
      %p161 = por %p159, %p160
      %p162 = scmp.ne.s32.totalorder %s151, %s154
      %p163 = scmp.eq.s32.totalorder %s24, 3
      %p164 = por %p162, %p163
      %p165 = scmp.ne.s32.totalorder %s154, %s155
      %p166 = scmp.eq.s32.totalorder %s24, 0
      %p167 = por %p165, %p166
      %p168 = scmp.ne.s32.totalorder %s154, %s155
      %p169 = scmp.eq.s32.totalorder %s25, 3
      %p170 = por %p168, %p169
      %p172 = scmp.ne.s32.totalorder %s155, %s171
      %p173 = scmp.eq.s32.totalorder %s25, 0
      %p174 = por %p172, %p173
      %s175 = ssub.s32 %s26, %s38
      %s176 = ssub.s32 %s27, %s34
      %s177 = sor.u32 %s175, %s176
      %p178 = scmp.eq.s32.totalorder %s177, 0
      %s180 = sadd.s32 %s179, 1
      %s181 = scalar_select %p178, %s179, %s180
      %p184 = pneg %p178
      %p185 = scmp.eq.s32.totalorder %s19, 3
      %p186 = por %p184, %p185
      %p187 = scmp.ne.s32.totalorder %s179, %s182
      %p188 = scmp.eq.s32.totalorder %s19, 0
      %p189 = por %p187, %p188
      %p190 = scmp.ne.s32.totalorder %s179, %s182
      %p191 = scmp.eq.s32.totalorder %s24, 3
      %p192 = por %p190, %p191
      %p193 = scmp.ne.s32.totalorder %s182, %s183
      %p194 = scmp.eq.s32.totalorder %s24, 0
      %p195 = por %p193, %p194
      %p196 = scmp.ne.s32.totalorder %s182, %s183
      %p197 = scmp.eq.s32.totalorder %s25, 3
      %p198 = por %p196, %p197
      %p200 = scmp.ne.s32.totalorder %s183, %s199
      %p201 = scmp.eq.s32.totalorder %s25, 0
      %p202 = por %p200, %p201
      %p203 = scmp.le.s32.totalorder 1, %s19
      %p204 = scmp.lt.s32.totalorder %s19, 5
      %p205 = pnand %p203, %p204
      %p206 = pneg %p205
      // Predicated region
      $region9: #{tpu_custom_call.1} parent=5 // pred_check
        _
      $region10: #{tpu_custom_call.1} parent=5 // pred_check_branch
        %208 = sbr.rel (%p205) target = $region12
      $region11: #{tpu_custom_call.1} parent=5 // pred_region
        %s209 = ssub.s32 %s19, 1
        // Predicated region
        $region13: #{tpu_custom_call.1} parent=11 // pred_check
          %p210 = pneg %p78
        $region14: #{tpu_custom_call.1} parent=11 // pred_check_branch
          %212 = sbr.rel (%p210) target = $region16
        $region15: #{tpu_custom_call.1} parent=11 // pred_region
          %s214 = ssub.s32 2048, 2048
          %215 = vsyncadd [#allocation7], %s214
          %s216 = sshll.u32 [#allocation6], 4
          %s217 = int_to_ptr.vmem [resolvable:$true] %s216
          %222 = dma.hbm_to_vmem [thread:$0]  %s1, 2048, %s217, [#allocation7], 128, 128, 8
        $region16: #{tpu_custom_call.1} parent=11 // pred_fallthru
          _
        // Predicated region
        $region17: #{tpu_custom_call.1} parent=11 // pred_check
          %p223 = pneg %p99
        $region18: #{tpu_custom_call.1} parent=11 // pred_check_branch
          %225 = sbr.rel (%p223) target = $region20
        $region19: #{tpu_custom_call.1} parent=11 // pred_region
          _
        $region20: #{tpu_custom_call.1} parent=11 // pred_fallthru
          _
        // Predicated region
        $region21: #{tpu_custom_call.1} parent=11 // pred_check
          %p226 = pneg %p120
        $region22: #{tpu_custom_call.1} parent=11 // pred_check_branch
          %228 = sbr.rel (%p226) target = $region24
        $region23: #{tpu_custom_call.1} parent=11 // pred_region
          _
        $region24: #{tpu_custom_call.1} parent=11 // pred_fallthru
          _
        // Predicated region
        $region25: #{tpu_custom_call.1} parent=11 // pred_check
          %p229 = pneg %p141
        $region26: #{tpu_custom_call.1} parent=11 // pred_check_branch
          %231 = sbr.rel (%p229) target = $region28
        $region27: #{tpu_custom_call.1} parent=11 // pred_region
          _
        $region28: #{tpu_custom_call.1} parent=11 // pred_fallthru
          _
      $region12: #{tpu_custom_call.1} parent=5 // pred_fallthru
        _
      %p232 = scmp.lt.s32.totalorder %s19, 4
      // Predicated region
      $region29: #{tpu_custom_call.1} parent=5 // pred_check
        %p233 = pneg %p232
      $region30: #{tpu_custom_call.1} parent=5 // pred_check_branch
        %235 = sbr.rel (%p233) target = $region32
      $region31: #{tpu_custom_call.1} parent=5 // pred_region
        // Predicated region
        $region33: #{tpu_custom_call.1} parent=31 // pred_check
          %p236 = pneg %p51
        $region34: #{tpu_custom_call.1} parent=31 // pred_check_branch
          %238 = sbr.rel (%p236) target = $region36
        $region35: #{tpu_custom_call.1} parent=31 // pred_region
          %s239 = sand.u32 %s19, 1
          %s240 = scalar_lea.sflag [#allocation4], %s239
          %s241 = sand.u32 %s41, 1
          %s242 = smul.addr %s241, 8
          %s243 = scalar_lea.vmem [#allocation3], %s242
          %s245 = ssub.s32 128, 128
          %246 = vsyncadd %s240, %s245
          %s247 = smul.addr %s26, 128
          %s248 = scalar_lea.hbm %s0, %s247
          %s250 = sshll.u32 %s243, 4
          %s251 = int_to_ptr.vmem [resolvable:$true] %s250
          %253 = dma.hbm_to_vmem [thread:$0]  %s248, 128, %s251, %s240
        $region36: #{tpu_custom_call.1} parent=31 // pred_fallthru
          _
        // Predicated region
        $region37: #{tpu_custom_call.1} parent=31 // pred_check
          %p254 = pneg %p161
        $region38: #{tpu_custom_call.1} parent=31 // pred_check_branch
          %256 = sbr.rel (%p254) target = $region40
        $region39: #{tpu_custom_call.1} parent=31 // pred_region
          %s257 = sand.u32 %s19, 1
          %s258 = scalar_lea.sflag [#allocation4], %s257
          %s259 = sand.u32 %s151, 1
          %s260 = smul.addr %s259, 256
          %s261 = scalar_lea.vmem [#allocation8], %s260
          %s262 = smul.u32 2, %s27
          %s264 = ssub.s32 4096, 4096
          %265 = vsyncadd %s258, %s264
          %s266 = smul.addr %s262, 128
          %s267 = scalar_lea.hbm %s5, %s266
          %s268 = sshll.u32 %s261, 4
          %s269 = int_to_ptr.vmem [resolvable:$true] %s268
          %274 = dma.hbm_to_vmem [thread:$0]  %s267, 4096, %s269, %s258, 512, 256, 16
        $region40: #{tpu_custom_call.1} parent=31 // pred_fallthru
          _
      $region32: #{tpu_custom_call.1} parent=5 // pred_fallthru
        _
      %p275 = scmp.le.s32.totalorder 1, %s19
      %p276 = scmp.lt.s32.totalorder %s19, 5
      %p277 = pnand %p275, %p276
      %p278 = pneg %p277
      // Predicated region
      $region41: #{tpu_custom_call.1} parent=5 // pred_check
        _
      $region42: #{tpu_custom_call.1} parent=5 // pred_check_branch
        %280 = sbr.rel (%p277) target = $region44
      $region43: #{tpu_custom_call.1} parent=5 // pred_region
        %s281 = ssub.s32 %s19, 1
        %s282 = sand.u32 %s24, 1
        %s283 = scalar_lea.sflag [#allocation4], %s282
        %s284 = sand.u32 %s44, 1
        %s285 = smul.addr %s284, 8
        %s286 = scalar_lea.vmem [#allocation3], %s285
        // Predicated region
        $region45: #{tpu_custom_call.1} parent=43 // pred_check
          %p287 = pneg %p57
        $region46: #{tpu_custom_call.1} parent=43 // pred_check_branch
          %289 = sbr.rel (%p287) target = $region48
        $region47: #{tpu_custom_call.1} parent=43 // pred_region
          %290 = dma.done %s283, 128
        $region48: #{tpu_custom_call.1} parent=43 // pred_fallthru
          _
        // Predicated region
        $region49: #{tpu_custom_call.1} parent=43 // pred_check
          %p291 = pneg %p78
        $region50: #{tpu_custom_call.1} parent=43 // pred_check_branch
          %293 = sbr.rel (%p291) target = $region52
        $region51: #{tpu_custom_call.1} parent=43 // pred_region
          %294 = dma.done [#allocation7], 2048
        $region52: #{tpu_custom_call.1} parent=43 // pred_fallthru
          _
        %s295 = sand.u32 %s24, 1
        %s296 = scalar_lea.sflag [#allocation4], %s295
        %s297 = sand.u32 %s154, 1
        %s298 = smul.addr %s297, 256
        %s299 = scalar_lea.vmem [#allocation8], %s298
        // Predicated region
        $region53: #{tpu_custom_call.1} parent=43 // pred_check
          %p300 = pneg %p167
        $region54: #{tpu_custom_call.1} parent=43 // pred_check_branch
          %302 = sbr.rel (%p300) target = $region56
        $region55: #{tpu_custom_call.1} parent=43 // pred_region
          %303 = dma.done %s296, 4096
        $region56: #{tpu_custom_call.1} parent=43 // pred_fallthru
          _
        %s304 = sand.u32 %s24, 1
        %s305 = scalar_lea.sflag [#allocation4], %s304
        %s306 = sand.u32 %s44, 1
        %s307 = smul.addr %s306, 8
        %s308 = scalar_lea.vmem [#allocation3], %s307
        %p309 = pneg %p57
        %p310 = pneg %p54
        %p311 = pneg %p78
        %p312 = pneg %p75
        %p313 = pneg %p99
        %p314 = pneg %p96
        %p315 = pneg %p120
        %p316 = pneg %p117
        %p317 = pneg %p141
        %p318 = pneg %p138
        %s319 = sand.u32 %s24, 1
        %s320 = scalar_lea.sflag [#allocation4], %s319
        %s321 = sand.u32 %s154, 1
        %s322 = smul.addr %s321, 256
        %s323 = scalar_lea.vmem [#allocation8], %s322
        %p324 = pneg %p167
        %p325 = pneg %p164
        %p326 = pneg %p195
        %p327 = pneg %p192
        %s328 = sand.u32 %s182, 1
        %s329 = scalar_lea.sflag [#allocation5], %s328
        %s330 = sand.u32 %s182, 1
        %s331 = smul.addr %s330, 16
        %s332 = scalar_lea.vmem [#allocation9], %s331
        %s333 = smul.u32 2, %s29
        %s334 = smul.u32 2, %s29
        %p335 = scmp.eq.s32.totalorder %s29, 0
        // Predicated region
        $region57: #{tpu_custom_call.1} parent=43 // pred_check
          %p336 = pneg %p335
        $region58: #{tpu_custom_call.1} parent=43 // pred_check_branch
          %338 = sbr.rel (%p336) target = $region60
        $region59: #{tpu_custom_call.1} parent=43 // pred_region
          %v339 = vld [vmem:[%s286] sm:$0xff]
          %v340 = vld [vmem:[#allocation6] sm:$0xff]
          %v341 = vld [vmem:[#allocation6 + $0x8] sm:$0xff]
          %v342 = vld [vmem:[#allocation6 + $0x10] sm:$0xff]
          %v343 = vld [vmem:[#allocation6 + $0x18] sm:$0xff]
          %v344 = vld [vmem:[#allocation6 + $0x20] sm:$0xff]
          %v345 = vld [vmem:[#allocation6 + $0x28] sm:$0xff]
          %v346 = vld [vmem:[#allocation6 + $0x30] sm:$0xff]
          %v347 = vld [vmem:[#allocation6 + $0x38] sm:$0xff]
          %v348 = vld [vmem:[#allocation6 + $0x40] sm:$0xff]
          %v349 = vld [vmem:[#allocation6 + $0x48] sm:$0xff]
          %v350 = vld [vmem:[#allocation6 + $0x50] sm:$0xff]
          %v351 = vld [vmem:[#allocation6 + $0x58] sm:$0xff]
          %v352 = vld [vmem:[#allocation6 + $0x60] sm:$0xff]
          %v353 = vld [vmem:[#allocation6 + $0x68] sm:$0xff]
          %v354 = vld [vmem:[#allocation6 + $0x70] sm:$0xff]
          %v355 = vld [vmem:[#allocation6 + $0x78] sm:$0xff]
          %v356 = vld [vmem:[%s2] sm:$0x1]
          %v358 = vlaneseq
          %v359 = vshrl.u32 %v358, 7
          %v360 = vsub.s32 0, %v359
          %v361 = vrot.slane %v356, %v360
          %363 = vmatprep.subr.mxu0 0.0
          %364 = vmatpush1.msra.mxu0 %v340
          %365 = vmatprep.subr.mxu0 0.0
          %366 = vmatpush1.msra.mxu0 %v341
          %367 = vmatprep.subr.mxu0 0.0
          %368 = vmatpush1.msra.mxu0 %v342
          %369 = vmatprep.subr.mxu0 0.0
          %370 = vmatpush1.msra.mxu0 %v343
          %371 = vmatprep.subr.mxu0 0.0
          %372 = vmatpush1.msra.mxu0 %v344
          %373 = vmatprep.subr.mxu0 0.0
          %374 = vmatpush1.msra.mxu0 %v345
          %375 = vmatprep.subr.mxu0 0.0
          %376 = vmatpush1.msra.mxu0 %v346
          %377 = vmatprep.subr.mxu0 0.0
          %378 = vmatpush1.msra.mxu0 %v347
          %379 = vmatprep.subr.mxu0 0.0
          %380 = vmatpush1.msra.mxu0 %v348
          %381 = vmatprep.subr.mxu0 0.0
          %382 = vmatpush1.msra.mxu0 %v349
          %383 = vmatprep.subr.mxu0 0.0
          %384 = vmatpush1.msra.mxu0 %v350
          %385 = vmatprep.subr.mxu0 0.0
          %386 = vmatpush1.msra.mxu0 %v351
          %387 = vmatprep.subr.mxu0 0.0
          %388 = vmatpush1.msra.mxu0 %v352
          %389 = vmatprep.subr.mxu0 0.0
          %390 = vmatpush1.msra.mxu0 %v353
          %391 = vmatprep.subr.mxu0 0.0
          %392 = vmatpush1.msra.mxu0 %v354
          %393 = vmatprep.subr.mxu0 0.0
          %394 = vmatpush1.msra.mxu0 %v355
          %395 = vmatprep.subr.mxu0 0.0
          %396 = vmatpush1.msra.mxu0 0.0
          %397 = vmatprep.subr.mxu0 0.0
          %398 = vmatpush1.msra.mxu0 0.0
          %399 = vmatprep.subr.mxu0 0.0
          %400 = vmatpush1.msra.mxu0 0.0
          %401 = vmatprep.subr.mxu0 0.0
          %402 = vmatpush1.msra.mxu0 0.0
          %403 = vmatprep.subr.mxu0 0.0
          %404 = vmatpush1.msra.mxu0 0.0
          %405 = vmatprep.subr.mxu0 0.0
          %406 = vmatpush1.msra.mxu0 0.0
          %407 = vmatprep.subr.mxu0 0.0
          %408 = vmatpush1.msra.mxu0 0.0
          %409 = vmatprep.subr.mxu0 0.0
          %410 = vmatpush1.msra.mxu0 0.0
          %411 = vmatprep.subr.mxu0 0.0
          %412 = vmatpush1.msra.mxu0 0.0
          %413 = vmatprep.subr.mxu0 0.0
          %414 = vmatpush1.msra.mxu0 0.0
          %415 = vmatprep.subr.mxu0 0.0
          %416 = vmatpush1.msra.mxu0 0.0
          %417 = vmatprep.subr.mxu0 0.0
          %418 = vmatpush1.msra.mxu0 0.0
          %419 = vmatprep.subr.mxu0 0.0
          %420 = vmatpush1.msra.mxu0 0.0
          %421 = vmatprep.subr.mxu0 0.0
          %422 = vmatpush1.msra.mxu0 0.0
          %423 = vmatprep.subr.mxu0 0.0
          %424 = vmatpush1.msra.mxu0 0.0
          %425 = vmatprep.subr.mxu0 0.0
          %426 = vmatpush1.msra.mxu0 0.0
          %427 = vmatprep.mubr.f32.mxu0 0.0
          %428 = vmatmul.mubr.f32.gmra.mrb[0].mxu0 %v339
          %v429 = vpop.f32.mrb[0].mxu0
          %v430 = vadd.f32 %v361, %v429
          %v431 = vpop.f32.mrb[0].mxu0
          %432 = vdwg.mxu0
          %v433 = vmul.f32 %v430, 0.5
          %v434 = vmul.f32 %v430, 0.70710677
          %v435 = verf.f32.pop %v434
          %v436 = vadd.f32 %v435, 1.0
          %v437 = vmul.f32 %v433, %v436
          %438 = vadd.xlane.f32.xlu0 %v437
          %v439 = vpop.xlane.xlu0 %438
          %v440 = vrcp.pop 128.0
          %v441 = vmul.f32 %v439, %v440
          %v442 = vsub.f32 %v437, %v441
          %v443 = vmul.f32 %v442, %v442
          %444 = vadd.xlane.f32.xlu0 %v443
          %v445 = vpop.xlane.xlu0 %444
          %v446 = vmul.f32 %v445, %v440
          %v447 = vadd.f32 %v446, 1e-12
          %v448 = vrsqrt.pop %v447
          %v449 = vmul.f32 %v442, %v448
          %v450 = vld [vmem:[%s3] sm:$0x1]
          %v452 = vlaneseq
          %v453 = vshrl.u32 %v452, 7
          %v454 = vsub.s32 0, %v453
          %v455 = vrot.slane %v450, %v454
          %v457 = vmul.f32 %v449, %v455
          %v458 = vld [vmem:[%s4] sm:$0x1]
          %v460 = vlaneseq
          %v461 = vshrl.u32 %v460, 7
          %v462 = vsub.s32 0, %v461
          %v463 = vrot.slane %v458, %v462
          %v465 = vadd.f32 %v457, %v463
          %466 = vst [vmem:[#allocation2] sm:$0xff] %v465
        $region60: #{tpu_custom_call.1} parent=43 // pred_fallthru
          _
        %v467 = vld [vmem:[#allocation2] sm:$0xff]
        %v468 = vld [vmem:[%s299] sm:$0xff]
        %v469 = vld [vmem:[%s299 + $0x8] sm:$0xff]
        %v470 = vld [vmem:[%s299 + $0x10] sm:$0xff]
        %v471 = vld [vmem:[%s299 + $0x18] sm:$0xff]
        %v472 = vld [vmem:[%s299 + $0x20] sm:$0xff]
        %v473 = vld [vmem:[%s299 + $0x28] sm:$0xff]
        %v474 = vld [vmem:[%s299 + $0x30] sm:$0xff]
        %v475 = vld [vmem:[%s299 + $0x38] sm:$0xff]
        %v476 = vld [vmem:[%s299 + $0x40] sm:$0xff]
        %v477 = vld [vmem:[%s299 + $0x48] sm:$0xff]
        %v478 = vld [vmem:[%s299 + $0x50] sm:$0xff]
        %v479 = vld [vmem:[%s299 + $0x58] sm:$0xff]
        %v480 = vld [vmem:[%s299 + $0x60] sm:$0xff]
        %v481 = vld [vmem:[%s299 + $0x68] sm:$0xff]
        %v482 = vld [vmem:[%s299 + $0x70] sm:$0xff]
        %v483 = vld [vmem:[%s299 + $0x78] sm:$0xff]
        %v484 = vld [vmem:[%s299 + $0x80] sm:$0xff]
        %v485 = vld [vmem:[%s299 + $0x88] sm:$0xff]
        %v486 = vld [vmem:[%s299 + $0x90] sm:$0xff]
        %v487 = vld [vmem:[%s299 + $0x98] sm:$0xff]
        %v488 = vld [vmem:[%s299 + $0xa0] sm:$0xff]
        %v489 = vld [vmem:[%s299 + $0xa8] sm:$0xff]
        %v490 = vld [vmem:[%s299 + $0xb0] sm:$0xff]
        %v491 = vld [vmem:[%s299 + $0xb8] sm:$0xff]
        %v492 = vld [vmem:[%s299 + $0xc0] sm:$0xff]
        %v493 = vld [vmem:[%s299 + $0xc8] sm:$0xff]
        %v494 = vld [vmem:[%s299 + $0xd0] sm:$0xff]
        %v495 = vld [vmem:[%s299 + $0xd8] sm:$0xff]
        %v496 = vld [vmem:[%s299 + $0xe0] sm:$0xff]
        %v497 = vld [vmem:[%s299 + $0xe8] sm:$0xff]
        %v498 = vld [vmem:[%s299 + $0xf0] sm:$0xff]
        %v499 = vld [vmem:[%s299 + $0xf8] sm:$0xff]
        %500 = vmatprep.subr.mxu0 %v469
        %501 = vmatpush1.msra.mxu0 %v468
        %502 = vmatprep.subr.mxu0 %v471
        %503 = vmatpush1.msra.mxu0 %v470
        %504 = vmatprep.subr.mxu0 %v473
        %505 = vmatpush1.msra.mxu0 %v472
        %506 = vmatprep.subr.mxu0 %v475
        %507 = vmatpush1.msra.mxu0 %v474
        %508 = vmatprep.subr.mxu0 %v477
        %509 = vmatpush1.msra.mxu0 %v476
        %510 = vmatprep.subr.mxu0 %v479
        %511 = vmatpush1.msra.mxu0 %v478
        %512 = vmatprep.subr.mxu0 %v481
        %513 = vmatpush1.msra.mxu0 %v480
        %514 = vmatprep.subr.mxu0 %v483
        %515 = vmatpush1.msra.mxu0 %v482
        %516 = vmatprep.subr.mxu0 %v485
        %517 = vmatpush1.msra.mxu0 %v484
        %518 = vmatprep.subr.mxu0 %v487
        %519 = vmatpush1.msra.mxu0 %v486
        %520 = vmatprep.subr.mxu0 %v489
        %521 = vmatpush1.msra.mxu0 %v488
        %522 = vmatprep.subr.mxu0 %v491
        %523 = vmatpush1.msra.mxu0 %v490
        %524 = vmatprep.subr.mxu0 %v493
        %525 = vmatpush1.msra.mxu0 %v492
        %526 = vmatprep.subr.mxu0 %v495
        %527 = vmatpush1.msra.mxu0 %v494
        %528 = vmatprep.subr.mxu0 %v497
        %529 = vmatpush1.msra.mxu0 %v496
        %530 = vmatprep.subr.mxu0 %v499
        %531 = vmatpush1.msra.mxu0 %v498
        %532 = vmatprep.subr.mxu0 0.0
        %533 = vmatpush1.msra.mxu0 0.0
        %534 = vmatprep.subr.mxu0 0.0
        %535 = vmatpush1.msra.mxu0 0.0
        %536 = vmatprep.subr.mxu0 0.0
        %537 = vmatpush1.msra.mxu0 0.0
        %538 = vmatprep.subr.mxu0 0.0
        %539 = vmatpush1.msra.mxu0 0.0
        %540 = vmatprep.subr.mxu0 0.0
        %541 = vmatpush1.msra.mxu0 0.0
        %542 = vmatprep.subr.mxu0 0.0
        %543 = vmatpush1.msra.mxu0 0.0
        %544 = vmatprep.subr.mxu0 0.0
        %545 = vmatpush1.msra.mxu0 0.0
        %546 = vmatprep.subr.mxu0 0.0
        %547 = vmatpush1.msra.mxu0 0.0
        %548 = vmatprep.subr.mxu0 0.0
        %549 = vmatpush1.msra.mxu0 0.0
        %550 = vmatprep.subr.mxu0 0.0
        %551 = vmatpush1.msra.mxu0 0.0
        %552 = vmatprep.subr.mxu0 0.0
        %553 = vmatpush1.msra.mxu0 0.0
        %554 = vmatprep.subr.mxu0 0.0
        %555 = vmatpush1.msra.mxu0 0.0
        %556 = vmatprep.subr.mxu0 0.0
        %557 = vmatpush1.msra.mxu0 0.0
        %558 = vmatprep.subr.mxu0 0.0
        %559 = vmatpush1.msra.mxu0 0.0
        %560 = vmatprep.subr.mxu0 0.0
        %561 = vmatpush1.msra.mxu0 0.0
        %562 = vmatprep.subr.mxu0 0.0
        %563 = vmatpush1.msra.mxu0 0.0
        %564 = vmatprep.mubr.f32.mxu0 0.0
        %565 = vmatmul.mubr.f32.gmra.mrb[0].mxu0 %v467
        %v566 = vpop.f32.mrb[0].mxu0
        %v567 = vadd.f32 0.0, %v566
        %v568 = vpop.f32.mrb[0].mxu0
        %v569 = vadd.f32 0.0, %v568
        %570 = vdwg.mxu0
        %571 = vst [vmem:[%s332] sm:$0xff] %v567
        %572 = vst [vmem:[%s332 + $0x8] sm:$0xff] %v569
        %s573 = sand.u32 %s182, 1
        %s574 = scalar_lea.sflag [#allocation5], %s573
        %s575 = sand.u32 %s182, 1
        %s576 = smul.addr %s575, 16
        %s577 = scalar_lea.vmem [#allocation9], %s576
        // Predicated region
        $region61: #{tpu_custom_call.1} parent=43 // pred_check
          %p578 = pneg %p192
        $region62: #{tpu_custom_call.1} parent=43 // pred_check_branch
          %580 = sbr.rel (%p578) target = $region64
        $region63: #{tpu_custom_call.1} parent=43 // pred_region
          %s581 = smul.u32 2, %s29
          %s583 = ssub.s32 256, 256
          %584 = vsyncadd %s574, %s583
          %s585 = smul.addr %s28, 4
          %s586 = sadd.s32 %s581, %s585
          %s587 = smul.addr %s586, 128
          %s588 = scalar_lea.hbm %s6, %s587
          %s590 = sshll.u32 %s577, 4
          %s591 = int_to_ptr.vmem [resolvable:$true] %s590
          %593 = dma.vmem_to_hbm [thread:$0]  %s591, 256, %s588, %s574
        $region64: #{tpu_custom_call.1} parent=43 // pred_fallthru
          _
      $region44: #{tpu_custom_call.1} parent=5 // pred_fallthru
        _
      %p594 = scmp.le.s32.totalorder 2, %s19
      // Predicated region
      $region65: #{tpu_custom_call.1} parent=5 // pred_check
        %p595 = pneg %p594
      $region66: #{tpu_custom_call.1} parent=5 // pred_check_branch
        %597 = sbr.rel (%p595) target = $region68
      $region67: #{tpu_custom_call.1} parent=5 // pred_region
        %s598 = ssub.s32 %s19, 2
        // Predicated region
        $region69: #{tpu_custom_call.1} parent=67 // pred_check
          %p599 = pneg %p198
        $region70: #{tpu_custom_call.1} parent=67 // pred_check_branch
          %601 = sbr.rel (%p599) target = $region72
        $region71: #{tpu_custom_call.1} parent=67 // pred_region
          %s602 = sand.u32 %s183, 1
          %s603 = scalar_lea.sflag [#allocation5], %s602
          %s604 = sand.u32 %s183, 1
          %s605 = smul.addr %s604, 16
          %s606 = scalar_lea.vmem [#allocation9], %s605
          %607 = dma.done %s603, 256
        $region72: #{tpu_custom_call.1} parent=67 // pred_fallthru
          _
      $region68: #{tpu_custom_call.1} parent=5 // pred_fallthru
        _
    $region6: #{tpu_custom_call.1} parent=1 // loop_footer
      %s23 = sadd.s32 1, %s19
    $region7: #{tpu_custom_call.1} parent=1 // loop_footer_branch
      %18 = sbr.rel target = $region3
    $region8: #{tpu_custom_call.1} parent=1 // loop_exit
      _
    %608 = vsyncpa [#allocation4], 1
    %s609 = scalar_lea.sflag [#allocation4], 1
    %610 = vsyncpa %s609, 1
    %611 = vsyncpa [#allocation7], 1
    %612 = vsyncpa [#allocation5], 1
    %s613 = scalar_lea.sflag [#allocation5], 1
    %614 = vsyncpa %s613, 1

// kernel: tpu_custom_call.1
$region0: #{tpu_custom_call.1}
  #allocation0 [shape = 'u32[]', space=smem, size = 0x4, offset = 0x4, fixed_abs, tag = 'smem constant byte address 0x4 - core index']
  #allocation1 [shape = 'u32[144,128]{1,0:T(1,128)}', space=vmem, size = 0x12000, scoped, tag = 'internal scratch']
  #allocation2 [shape = 'f32[8,128]{1,0:T(8,128)}', space=vmem, size = 0x1000, scoped, tag = 'scratch operand']
  %s0 = inlined_call_operand.hbm [shape: f32[16,128], index: 0, kind: input, shape index: {}]
  %s1 = inlined_call_operand.hbm [shape: f32[128,128], index: 1, kind: input, shape index: {}]
  %s2 = inlined_call_operand.vmem [shape: f32[1,128], index: 2, kind: input, shape index: {}]
  %s3 = inlined_call_operand.vmem [shape: f32[1,128], index: 3, kind: input, shape index: {}]
  %s4 = inlined_call_operand.vmem [shape: f32[1,128], index: 4, kind: input, shape index: {}]
  %s5 = inlined_call_operand.hbm [shape: f32[128,512], index: 5, kind: input, shape index: {}]
  %s6 = inlined_call_operand.hbm [shape: f32[16,512], index: 6, kind: output, shape index: {}]
  %s7 = sld [smem:[#allocation0]]
  $region73: #{tpu_custom_call.1} parent=0
    _
  %s9 = ssub.s32 1, %s7
  %s10 = scalar_select 0, %s9, %s7
  $region1: #{tpu_custom_call.1} parent=0
    #allocation3 [shape = 'u8[8192]{0}', space=vmem, size = 0x2000, scoped, tag = 'input window, operand 0']
    #allocation4 [shape = 's32[2]{0}', space=sflag, size = 0x8, scoped, tag = 'scoped memory for tpu_custom_call.1']
    #allocation5 [shape = 's32[2]{0}', space=sflag, size = 0x8, scoped, tag = 'scoped memory for tpu_custom_call.1']
    #allocation6 [shape = 'u8[65536]{0}', space=vmem, size = 0x10000, scoped, tag = 'input window, operand 1, single buffered']
    #allocation7 [shape = 's32[1]{0}', space=sflag, size = 0x4, scoped, tag = 'scoped memory for tpu_custom_call.1']
    #allocation8 [shape = 'u8[262144]{0}', space=vmem, size = 0x40000, scoped, tag = 'input window, operand 5']
    #allocation9 [shape = 'u8[16384]{0}', space=vmem, size = 0x4000, scoped, tag = 'output window, operand 0']
    %11 = vsyncpa [#allocation4], 0
    %s12 = scalar_lea.sflag [#allocation4], 1
    %13 = vsyncpa %s12, 0
    %14 = vsyncpa [#allocation7], 0
    %15 = vsyncpa [#allocation5], 0
    %s16 = scalar_lea.sflag [#allocation5], 1
    %17 = vsyncpa %s16, 0
    loop: start=0, step=1, limit=6
    $region2: #{tpu_custom_call.1} parent=1 // loop_pre_header
      _
    $region3: #{tpu_custom_call.1} parent=1 // loop_header
      %s19 = sphi 0, %s23
      %p20 = scmp.ge.s32.totalorder %s19, 6
      %s26 = sphi 0, %s38
      %s27 = sphi 0, %s34
      %s28 = sphi 0, %s26
      %s29 = sphi 0, %s27
      %s30 = sphi 0, %s28
      %s31 = sphi 0, %s29
      %s41 = sphi 0, %s43
      %s44 = sphi 0, %s41
      %s45 = sphi 0, %s44
      %s61 = sphi 0, %s45
      %s65 = sphi 0, %s65
      %s67 = sphi 0, %s65
      %s68 = sphi 0, %s67
      %s82 = sphi 0, %s68
      %s86 = sphi 0, %s86
      %s88 = sphi 0, %s86
      %s89 = sphi 0, %s88
      %s103 = sphi 0, %s89
      %s107 = sphi 0, %s107
      %s109 = sphi 0, %s107
      %s110 = sphi 0, %s109
      %s124 = sphi 0, %s110
      %s128 = sphi 0, %s128
      %s130 = sphi 0, %s128
      %s131 = sphi 0, %s130
      %s145 = sphi 0, %s131
      %s151 = sphi 0, %s153
      %s154 = sphi 0, %s151
      %s155 = sphi 0, %s154
      %s171 = sphi 0, %s155
      %s179 = sphi 0, %s181
      %s182 = sphi 0, %s179
      %s183 = sphi 0, %s182
      %s199 = sphi 0, %s183
    $region4: #{tpu_custom_call.1} parent=1 // loop_header_branch
      %22 = sbr.rel (%p20) target = $region8
    $region5: #{tpu_custom_call.1} parent=1 // loop_body
      %s24 = ssub.s32 %s19, 1
      %s25 = ssub.s32 %s19, 2
      %s32 = sadd.s32 1, %s27
      %p33 = scmp.ge.s32.totalorder %s32, 2
      %s34 = scalar_select %p33, 0, %s32
      %s35 = sadd.s32 1, %s26
      %s36 = scalar_select %p33, %s35, %s26
      %p37 = scmp.ge.s32.totalorder %s36, 2
      %s38 = scalar_select %p37, 0, %s36
      %s39 = ssub.s32 %s26, %s38
      %p40 = scmp.eq.s32.totalorder %s39, 0
      %s42 = sadd.s32 %s41, 1
      %s43 = scalar_select %p40, %s41, %s42
      %p46 = pneg %p40
      %p47 = scmp.eq.s32.totalorder %s19, 3
      %p48 = por %p46, %p47
      %p49 = scmp.ne.s32.totalorder %s41, %s44
      %p50 = scmp.eq.s32.totalorder %s19, 0
      %p51 = por %p49, %p50
      %p52 = scmp.ne.s32.totalorder %s41, %s44
      %p53 = scmp.eq.s32.totalorder %s24, 3
      %p54 = por %p52, %p53
      %p55 = scmp.ne.s32.totalorder %s44, %s45
      %p56 = scmp.eq.s32.totalorder %s24, 0
      %p57 = por %p55, %p56
      %p58 = scmp.ne.s32.totalorder %s44, %s45
      %p59 = scmp.eq.s32.totalorder %s25, 3
      %p60 = por %p58, %p59
      %p62 = scmp.ne.s32.totalorder %s45, %s61
      %p63 = scmp.eq.s32.totalorder %s25, 0
      %p64 = por %p62, %p63
      %s66 = sadd.s32 %s65, 1
      %p69 = scmp.eq.s32.totalorder %s19, 3
      %p70 = scmp.ne.s32.totalorder %s65, %s67
      %p71 = scmp.eq.s32.totalorder %s19, 0
      %p72 = por %p70, %p71
      %p73 = scmp.ne.s32.totalorder %s65, %s67
      %p74 = scmp.eq.s32.totalorder %s24, 3
      %p75 = por %p73, %p74
      %p76 = scmp.ne.s32.totalorder %s67, %s68
      %p77 = scmp.eq.s32.totalorder %s24, 0
      %p78 = por %p76, %p77
      %p79 = scmp.ne.s32.totalorder %s67, %s68
      %p80 = scmp.eq.s32.totalorder %s25, 3
      %p81 = por %p79, %p80
      %p83 = scmp.ne.s32.totalorder %s68, %s82
      %p84 = scmp.eq.s32.totalorder %s25, 0
      %p85 = por %p83, %p84
      %s87 = sadd.s32 %s86, 1
      %p90 = scmp.eq.s32.totalorder %s19, 3
      %p91 = scmp.ne.s32.totalorder %s86, %s88
      %p92 = scmp.eq.s32.totalorder %s19, 0
      %p93 = por %p91, %p92
      %p94 = scmp.ne.s32.totalorder %s86, %s88
      %p95 = scmp.eq.s32.totalorder %s24, 3
      %p96 = por %p94, %p95
      %p97 = scmp.ne.s32.totalorder %s88, %s89
      %p98 = scmp.eq.s32.totalorder %s24, 0
      %p99 = por %p97, %p98
      %p100 = scmp.ne.s32.totalorder %s88, %s89
      %p101 = scmp.eq.s32.totalorder %s25, 3
      %p102 = por %p100, %p101
      %p104 = scmp.ne.s32.totalorder %s89, %s103
      %p105 = scmp.eq.s32.totalorder %s25, 0
      %p106 = por %p104, %p105
      %s108 = sadd.s32 %s107, 1
      %p111 = scmp.eq.s32.totalorder %s19, 3
      %p112 = scmp.ne.s32.totalorder %s107, %s109
      %p113 = scmp.eq.s32.totalorder %s19, 0
      %p114 = por %p112, %p113
      %p115 = scmp.ne.s32.totalorder %s107, %s109
      %p116 = scmp.eq.s32.totalorder %s24, 3
      %p117 = por %p115, %p116
      %p118 = scmp.ne.s32.totalorder %s109, %s110
      %p119 = scmp.eq.s32.totalorder %s24, 0
      %p120 = por %p118, %p119
      %p121 = scmp.ne.s32.totalorder %s109, %s110
      %p122 = scmp.eq.s32.totalorder %s25, 3
      %p123 = por %p121, %p122
      %p125 = scmp.ne.s32.totalorder %s110, %s124
      %p126 = scmp.eq.s32.totalorder %s25, 0
      %p127 = por %p125, %p126
      %s129 = sadd.s32 %s128, 1
      %p132 = scmp.eq.s32.totalorder %s19, 3
      %p133 = scmp.ne.s32.totalorder %s128, %s130
      %p134 = scmp.eq.s32.totalorder %s19, 0
      %p135 = por %p133, %p134
      %p136 = scmp.ne.s32.totalorder %s128, %s130
      %p137 = scmp.eq.s32.totalorder %s24, 3
      %p138 = por %p136, %p137
      %p139 = scmp.ne.s32.totalorder %s130, %s131
      %p140 = scmp.eq.s32.totalorder %s24, 0
      %p141 = por %p139, %p140
      %p142 = scmp.ne.s32.totalorder %s130, %s131
      %p143 = scmp.eq.s32.totalorder %s25, 3
      %p144 = por %p142, %p143
      %p146 = scmp.ne.s32.totalorder %s131, %s145
      %p147 = scmp.eq.s32.totalorder %s25, 0
      %p148 = por %p146, %p147
      %s149 = ssub.s32 %s27, %s34
      %p150 = scmp.eq.s32.totalorder %s149, 0
      %s152 = sadd.s32 %s151, 1
      %s153 = scalar_select %p150, %s151, %s152
      %p156 = pneg %p150
      %p157 = scmp.eq.s32.totalorder %s19, 3
      %p158 = por %p156, %p157
      %p159 = scmp.ne.s32.totalorder %s151, %s154
      %p160 = scmp.eq.s32.totalorder %s19, 0
      %p161 = por %p159, %p160
      %p162 = scmp.ne.s32.totalorder %s151, %s154
      %p163 = scmp.eq.s32.totalorder %s24, 3
      %p164 = por %p162, %p163
      %p165 = scmp.ne.s32.totalorder %s154, %s155
      %p166 = scmp.eq.s32.totalorder %s24, 0
      %p167 = por %p165, %p166
      %p168 = scmp.ne.s32.totalorder %s154, %s155
      %p169 = scmp.eq.s32.totalorder %s25, 3
      %p170 = por %p168, %p169
      %p172 = scmp.ne.s32.totalorder %s155, %s171
      %p173 = scmp.eq.s32.totalorder %s25, 0
      %p174 = por %p172, %p173
      %s175 = ssub.s32 %s26, %s38
      %s176 = ssub.s32 %s27, %s34
      %s177 = sor.u32 %s175, %s176
      %p178 = scmp.eq.s32.totalorder %s177, 0
      %s180 = sadd.s32 %s179, 1
      %s181 = scalar_select %p178, %s179, %s180
      %p184 = pneg %p178
      %p185 = scmp.eq.s32.totalorder %s19, 3
      %p186 = por %p184, %p185
      %p187 = scmp.ne.s32.totalorder %s179, %s182
      %p188 = scmp.eq.s32.totalorder %s19, 0
      %p189 = por %p187, %p188
      %p190 = scmp.ne.s32.totalorder %s179, %s182
      %p191 = scmp.eq.s32.totalorder %s24, 3
      %p192 = por %p190, %p191
      %p193 = scmp.ne.s32.totalorder %s182, %s183
      %p194 = scmp.eq.s32.totalorder %s24, 0
      %p195 = por %p193, %p194
      %p196 = scmp.ne.s32.totalorder %s182, %s183
      %p197 = scmp.eq.s32.totalorder %s25, 3
      %p198 = por %p196, %p197
      %p200 = scmp.ne.s32.totalorder %s183, %s199
      %p201 = scmp.eq.s32.totalorder %s25, 0
      %p202 = por %p200, %p201
      %p203 = scmp.le.s32.totalorder 1, %s19
      %p204 = scmp.lt.s32.totalorder %s19, 5
      %p205 = pnand %p203, %p204
      %p206 = pneg %p205
      // Predicated region
      $region9: #{tpu_custom_call.1} parent=5 // pred_check
        _
      $region10: #{tpu_custom_call.1} parent=5 // pred_check_branch
        %208 = sbr.rel (%p205) target = $region12
      $region11: #{tpu_custom_call.1} parent=5 // pred_region
        %s209 = ssub.s32 %s19, 1
        // Predicated region
        $region13: #{tpu_custom_call.1} parent=11 // pred_check
          %p210 = pneg %p78
        $region14: #{tpu_custom_call.1} parent=11 // pred_check_branch
          %212 = sbr.rel (%p210) target = $region16
        $region15: #{tpu_custom_call.1} parent=11 // pred_region
          %s214 = ssub.s32 2048, 2048
          %215 = vsyncadd [#allocation7], %s214
          %s216 = sshll.u32 [#allocation6], 4
          %s217 = int_to_ptr.vmem [resolvable:$true] %s216
          %222 = dma.hbm_to_vmem [thread:$0]  %s1, 2048, %s217, [#allocation7], 128, 128, 8
        $region16: #{tpu_custom_call.1} parent=11 // pred_fallthru
          _
        // Predicated region
        $region17: #{tpu_custom_call.1} parent=11 // pred_check
          %p223 = pneg %p99
        $region18: #{tpu_custom_call.1} parent=11 // pred_check_branch
          %225 = sbr.rel (%p223) target = $region20
        $region19: #{tpu_custom_call.1} parent=11 // pred_region
          _
        $region20: #{tpu_custom_call.1} parent=11 // pred_fallthru
          _
        // Predicated region
        $region21: #{tpu_custom_call.1} parent=11 // pred_check
          %p226 = pneg %p120
        $region22: #{tpu_custom_call.1} parent=11 // pred_check_branch
          %228 = sbr.rel (%p226) target = $region24
        $region23: #{tpu_custom_call.1} parent=11 // pred_region
          _
        $region24: #{tpu_custom_call.1} parent=11 // pred_fallthru
          _
        // Predicated region
        $region25: #{tpu_custom_call.1} parent=11 // pred_check
          %p229 = pneg %p141
        $region26: #{tpu_custom_call.1} parent=11 // pred_check_branch
          %231 = sbr.rel (%p229) target = $region28
        $region27: #{tpu_custom_call.1} parent=11 // pred_region
          _
        $region28: #{tpu_custom_call.1} parent=11 // pred_fallthru
          _
      $region12: #{tpu_custom_call.1} parent=5 // pred_fallthru
        _
      %p232 = scmp.lt.s32.totalorder %s19, 4
      // Predicated region
      $region29: #{tpu_custom_call.1} parent=5 // pred_check
        %p233 = pneg %p232
      $region30: #{tpu_custom_call.1} parent=5 // pred_check_branch
        %235 = sbr.rel (%p233) target = $region32
      $region31: #{tpu_custom_call.1} parent=5 // pred_region
        // Predicated region
        $region33: #{tpu_custom_call.1} parent=31 // pred_check
          %p236 = pneg %p51
        $region34: #{tpu_custom_call.1} parent=31 // pred_check_branch
          %238 = sbr.rel (%p236) target = $region36
        $region35: #{tpu_custom_call.1} parent=31 // pred_region
          %s239 = sand.u32 %s19, 1
          %s240 = scalar_lea.sflag [#allocation4], %s239
          %s241 = sand.u32 %s41, 1
          %s242 = smul.addr %s241, 8
          %s243 = scalar_lea.vmem [#allocation3], %s242
          %s245 = ssub.s32 128, 128
          %246 = vsyncadd %s240, %s245
          %s247 = smul.addr %s26, 128
          %s248 = scalar_lea.hbm %s0, %s247
          %s250 = sshll.u32 %s243, 4
          %s251 = int_to_ptr.vmem [resolvable:$true] %s250
          %253 = dma.hbm_to_vmem [thread:$0]  %s248, 128, %s251, %s240
        $region36: #{tpu_custom_call.1} parent=31 // pred_fallthru
          _
        // Predicated region
        $region37: #{tpu_custom_call.1} parent=31 // pred_check
          %p254 = pneg %p161
        $region38: #{tpu_custom_call.1} parent=31 // pred_check_branch
          %256 = sbr.rel (%p254) target = $region40
        $region39: #{tpu_custom_call.1} parent=31 // pred_region
          %s257 = sand.u32 %s19, 1
          %s258 = scalar_lea.sflag [#allocation4], %s257
          %s259 = sand.u32 %s151, 1
          %s260 = smul.addr %s259, 256
          %s261 = scalar_lea.vmem [#allocation8], %s260
          %s262 = smul.u32 2, %s27
          %s264 = ssub.s32 4096, 4096
          %265 = vsyncadd %s258, %s264
          %s266 = smul.addr %s262, 128
          %s267 = scalar_lea.hbm %s5, %s266
          %s268 = sshll.u32 %s261, 4
          %s269 = int_to_ptr.vmem [resolvable:$true] %s268
          %274 = dma.hbm_to_vmem [thread:$0]  %s267, 4096, %s269, %s258, 512, 256, 16
        $region40: #{tpu_custom_call.1} parent=31 // pred_fallthru
          _
      $region32: #{tpu_custom_call.1} parent=5 // pred_fallthru
        _
      %p275 = scmp.le.s32.totalorder 1, %s19
      %p276 = scmp.lt.s32.totalorder %s19, 5
      %p277 = pnand %p275, %p276
      %p278 = pneg %p277
      // Predicated region
      $region41: #{tpu_custom_call.1} parent=5 // pred_check
        _
      $region42: #{tpu_custom_call.1} parent=5 // pred_check_branch
        %280 = sbr.rel (%p277) target = $region44
      $region43: #{tpu_custom_call.1} parent=5 // pred_region
        %s281 = ssub.s32 %s19, 1
        %s282 = sand.u32 %s24, 1
        %s283 = scalar_lea.sflag [#allocation4], %s282
        %s284 = sand.u32 %s44, 1
        %s285 = smul.addr %s284, 8
        %s286 = scalar_lea.vmem [#allocation3], %s285
        // Predicated region
        $region45: #{tpu_custom_call.1} parent=43 // pred_check
          %p287 = pneg %p57
        $region46: #{tpu_custom_call.1} parent=43 // pred_check_branch
          %289 = sbr.rel (%p287) target = $region48
        $region47: #{tpu_custom_call.1} parent=43 // pred_region
          %290 = dma.done %s283, 128
        $region48: #{tpu_custom_call.1} parent=43 // pred_fallthru
          _
        // Predicated region
        $region49: #{tpu_custom_call.1} parent=43 // pred_check
          %p291 = pneg %p78
        $region50: #{tpu_custom_call.1} parent=43 // pred_check_branch
          %293 = sbr.rel (%p291) target = $region52
        $region51: #{tpu_custom_call.1} parent=43 // pred_region
          %294 = dma.done [#allocation7], 2048
        $region52: #{tpu_custom_call.1} parent=43 // pred_fallthru
          _
        %s295 = sand.u32 %s24, 1
        %s296 = scalar_lea.sflag [#allocation4], %s295
        %s297 = sand.u32 %s154, 1
        %s298 = smul.addr %s297, 256
        %s299 = scalar_lea.vmem [#allocation8], %s298
        // Predicated region
        $region53: #{tpu_custom_call.1} parent=43 // pred_check
          %p300 = pneg %p167
        $region54: #{tpu_custom_call.1} parent=43 // pred_check_branch
          %302 = sbr.rel (%p300) target = $region56
        $region55: #{tpu_custom_call.1} parent=43 // pred_region
          %303 = dma.done %s296, 4096
        $region56: #{tpu_custom_call.1} parent=43 // pred_fallthru
          _
        %s304 = sand.u32 %s24, 1
        %s305 = scalar_lea.sflag [#allocation4], %s304
        %s306 = sand.u32 %s44, 1
        %s307 = smul.addr %s306, 8
        %s308 = scalar_lea.vmem [#allocation3], %s307
        %p309 = pneg %p57
        %p310 = pneg %p54
        %p311 = pneg %p78
        %p312 = pneg %p75
        %p313 = pneg %p99
        %p314 = pneg %p96
        %p315 = pneg %p120
        %p316 = pneg %p117
        %p317 = pneg %p141
        %p318 = pneg %p138
        %s319 = sand.u32 %s24, 1
        %s320 = scalar_lea.sflag [#allocation4], %s319
        %s321 = sand.u32 %s154, 1
        %s322 = smul.addr %s321, 256
        %s323 = scalar_lea.vmem [#allocation8], %s322
        %p324 = pneg %p167
        %p325 = pneg %p164
        %p326 = pneg %p195
        %p327 = pneg %p192
        %s328 = sand.u32 %s182, 1
        %s329 = scalar_lea.sflag [#allocation5], %s328
        %s330 = sand.u32 %s182, 1
        %s331 = smul.addr %s330, 16
        %s332 = scalar_lea.vmem [#allocation9], %s331
        %s333 = smul.u32 2, %s29
        %s334 = smul.u32 2, %s29
        %p335 = scmp.eq.s32.totalorder %s29, 0
        // Predicated region
        $region57: #{tpu_custom_call.1} parent=43 // pred_check
          %p336 = pneg %p335
        $region58: #{tpu_custom_call.1} parent=43 // pred_check_branch
          %338 = sbr.rel (%p336) target = $region60
        $region59: #{tpu_custom_call.1} parent=43 // pred_region
          %v339 = vld [vmem:[%s286] sm:$0xff]
          %v340 = vld [vmem:[#allocation6] sm:$0xff]
          %v341 = vld [vmem:[#allocation6 + $0x8] sm:$0xff]
          %v342 = vld [vmem:[#allocation6 + $0x10] sm:$0xff]
          %v343 = vld [vmem:[#allocation6 + $0x18] sm:$0xff]
          %v344 = vld [vmem:[#allocation6 + $0x20] sm:$0xff]
          %v345 = vld [vmem:[#allocation6 + $0x28] sm:$0xff]
          %v346 = vld [vmem:[#allocation6 + $0x30] sm:$0xff]
          %v347 = vld [vmem:[#allocation6 + $0x38] sm:$0xff]
          %v348 = vld [vmem:[#allocation6 + $0x40] sm:$0xff]
          %v349 = vld [vmem:[#allocation6 + $0x48] sm:$0xff]
          %v350 = vld [vmem:[#allocation6 + $0x50] sm:$0xff]
          %v351 = vld [vmem:[#allocation6 + $0x58] sm:$0xff]
          %v352 = vld [vmem:[#allocation6 + $0x60] sm:$0xff]
          %v353 = vld [vmem:[#allocation6 + $0x68] sm:$0xff]
          %v354 = vld [vmem:[#allocation6 + $0x70] sm:$0xff]
          %v355 = vld [vmem:[#allocation6 + $0x78] sm:$0xff]
          %v356 = vld [vmem:[%s2] sm:$0x1]
          %v358 = vlaneseq
          %v359 = vshrl.u32 %v358, 7
          %v360 = vsub.s32 0, %v359
          %v361 = vrot.slane %v356, %v360
          %363 = vmatprep.subr.mxu0 0.0
          %364 = vmatpush1.msra.mxu0 %v340
          %365 = vmatprep.subr.mxu0 0.0
          %366 = vmatpush1.msra.mxu0 %v341
          %367 = vmatprep.subr.mxu0 0.0
          %368 = vmatpush1.msra.mxu0 %v342
          %369 = vmatprep.subr.mxu0 0.0
          %370 = vmatpush1.msra.mxu0 %v343
          %371 = vmatprep.subr.mxu0 0.0
          %372 = vmatpush1.msra.mxu0 %v344
          %373 = vmatprep.subr.mxu0 0.0
          %374 = vmatpush1.msra.mxu0 %v345
          %375 = vmatprep.subr.mxu0 0.0
          %376 = vmatpush1.msra.mxu0 %v346
          %377 = vmatprep.subr.mxu0 0.0
          %378 = vmatpush1.msra.mxu0 %v347
          %379 = vmatprep.subr.mxu0 0.0
          %380 = vmatpush1.msra.mxu0 %v348
          %381 = vmatprep.subr.mxu0 0.0
          %382 = vmatpush1.msra.mxu0 %v349
          %383 = vmatprep.subr.mxu0 0.0
          %384 = vmatpush1.msra.mxu0 %v350
          %385 = vmatprep.subr.mxu0 0.0
          %386 = vmatpush1.msra.mxu0 %v351
          %387 = vmatprep.subr.mxu0 0.0
          %388 = vmatpush1.msra.mxu0 %v352
          %389 = vmatprep.subr.mxu0 0.0
          %390 = vmatpush1.msra.mxu0 %v353
          %391 = vmatprep.subr.mxu0 0.0
          %392 = vmatpush1.msra.mxu0 %v354
          %393 = vmatprep.subr.mxu0 0.0
          %394 = vmatpush1.msra.mxu0 %v355
          %395 = vmatprep.subr.mxu0 0.0
          %396 = vmatpush1.msra.mxu0 0.0
          %397 = vmatprep.subr.mxu0 0.0
          %398 = vmatpush1.msra.mxu0 0.0
          %399 = vmatprep.subr.mxu0 0.0
          %400 = vmatpush1.msra.mxu0 0.0
          %401 = vmatprep.subr.mxu0 0.0
          %402 = vmatpush1.msra.mxu0 0.0
          %403 = vmatprep.subr.mxu0 0.0
          %404 = vmatpush1.msra.mxu0 0.0
          %405 = vmatprep.subr.mxu0 0.0
          %406 = vmatpush1.msra.mxu0 0.0
          %407 = vmatprep.subr.mxu0 0.0
          %408 = vmatpush1.msra.mxu0 0.0
          %409 = vmatprep.subr.mxu0 0.0
          %410 = vmatpush1.msra.mxu0 0.0
          %411 = vmatprep.subr.mxu0 0.0
          %412 = vmatpush1.msra.mxu0 0.0
          %413 = vmatprep.subr.mxu0 0.0
          %414 = vmatpush1.msra.mxu0 0.0
          %415 = vmatprep.subr.mxu0 0.0
          %416 = vmatpush1.msra.mxu0 0.0
          %417 = vmatprep.subr.mxu0 0.0
          %418 = vmatpush1.msra.mxu0 0.0
          %419 = vmatprep.subr.mxu0 0.0
          %420 = vmatpush1.msra.mxu0 0.0
          %421 = vmatprep.subr.mxu0 0.0
          %422 = vmatpush1.msra.mxu0 0.0
          %423 = vmatprep.subr.mxu0 0.0
          %424 = vmatpush1.msra.mxu0 0.0
          %425 = vmatprep.subr.mxu0 0.0
          %426 = vmatpush1.msra.mxu0 0.0
          %427 = vmatprep.mubr.f32.mxu0 0.0
          %428 = vmatmul.mubr.f32.gmra.mrb[0].mxu0 %v339
          %v429 = vpop.f32.mrb[0].mxu0
          %v430 = vadd.f32 %v361, %v429
          %v431 = vpop.f32.mrb[0].mxu0
          %432 = vdwg.mxu0
          %v433 = vmul.f32 %v430, 0.5
          %v434 = vmul.f32 %v430, 0.70710677
          %v435 = verf.f32.pop %v434
          %v436 = vadd.f32 %v435, 1.0
          %v437 = vmul.f32 %v433, %v436
          %438 = vadd.xlane.f32.xlu0 %v437
          %v439 = vpop.xlane.xlu0 %438
          %v440 = vrcp.pop 128.0
          %v441 = vmul.f32 %v439, %v440
          %v442 = vsub.f32 %v437, %v441
          %v443 = vmul.f32 %v442, %v442
          %444 = vadd.xlane.f32.xlu0 %v443
          %v445 = vpop.xlane.xlu0 %444
          %v446 = vmul.f32 %v445, %v440
          %v447 = vadd.f32 %v446, 1e-12
          %v448 = vrsqrt.pop %v447
          %v449 = vmul.f32 %v442, %v448
          %v450 = vld [vmem:[%s3] sm:$0x1]
          %v452 = vlaneseq
          %v453 = vshrl.u32 %v452, 7
          %v454 = vsub.s32 0, %v453
          %v455 = vrot.slane %v450, %v454
          %v457 = vmul.f32 %v449, %v455
          %v458 = vld [vmem:[%s4] sm:$0x1]
          %v460 = vlaneseq
          %v461 = vshrl.u32 %v460, 7
          %v462 = vsub.s32 0, %v461
          %v463 = vrot.slane %v458, %v462
          %v465 = vadd.f32 %v457, %v463
          %466 = vst [vmem:[#allocation2] sm:$0xff] %v465
        $region60: #{tpu_custom_call.1} parent=43 // pred_fallthru
          _
        %v467 = vld [vmem:[#allocation2] sm:$0xff]
        %v468 = vld [vmem:[%s299] sm:$0xff]
        %v469 = vld [vmem:[%s299 + $0x8] sm:$0xff]
        %v470 = vld [vmem:[%s299 + $0x10] sm:$0xff]
        %v471 = vld [vmem:[%s299 + $0x18] sm:$0xff]
        %v472 = vld [vmem:[%s299 + $0x20] sm:$0xff]
        %v473 = vld [vmem:[%s299 + $0x28] sm:$0xff]
        %v474 = vld [vmem:[%s299 + $0x30] sm:$0xff]
        %v475 = vld [vmem:[%s299 + $0x38] sm:$0xff]
        %v476 = vld [vmem:[%s299 + $0x40] sm:$0xff]
        %v477 = vld [vmem:[%s299 + $0x48] sm:$0xff]
        %v478 = vld [vmem:[%s299 + $0x50] sm:$0xff]
        %v479 = vld [vmem:[%s299 + $0x58] sm:$0xff]
        %v480 = vld [vmem:[%s299 + $0x60] sm:$0xff]
        %v481 = vld [vmem:[%s299 + $0x68] sm:$0xff]
        %v482 = vld [vmem:[%s299 + $0x70] sm:$0xff]
        %v483 = vld [vmem:[%s299 + $0x78] sm:$0xff]
        %v484 = vld [vmem:[%s299 + $0x80] sm:$0xff]
        %v485 = vld [vmem:[%s299 + $0x88] sm:$0xff]
        %v486 = vld [vmem:[%s299 + $0x90] sm:$0xff]
        %v487 = vld [vmem:[%s299 + $0x98] sm:$0xff]
        %v488 = vld [vmem:[%s299 + $0xa0] sm:$0xff]
        %v489 = vld [vmem:[%s299 + $0xa8] sm:$0xff]
        %v490 = vld [vmem:[%s299 + $0xb0] sm:$0xff]
        %v491 = vld [vmem:[%s299 + $0xb8] sm:$0xff]
        %v492 = vld [vmem:[%s299 + $0xc0] sm:$0xff]
        %v493 = vld [vmem:[%s299 + $0xc8] sm:$0xff]
        %v494 = vld [vmem:[%s299 + $0xd0] sm:$0xff]
        %v495 = vld [vmem:[%s299 + $0xd8] sm:$0xff]
        %v496 = vld [vmem:[%s299 + $0xe0] sm:$0xff]
        %v497 = vld [vmem:[%s299 + $0xe8] sm:$0xff]
        %v498 = vld [vmem:[%s299 + $0xf0] sm:$0xff]
        %v499 = vld [vmem:[%s299 + $0xf8] sm:$0xff]
        %500 = vmatprep.subr.mxu0 %v469
        %501 = vmatpush1.msra.mxu0 %v468
        %502 = vmatprep.subr.mxu0 %v471
        %503 = vmatpush1.msra.mxu0 %v470
        %504 = vmatprep.subr.mxu0 %v473
        %505 = vmatpush1.msra.mxu0 %v472
        %506 = vmatprep.subr.mxu0 %v475
        %507 = vmatpush1.msra.mxu0 %v474
        %508 = vmatprep.subr.mxu0 %v477
        %509 = vmatpush1.msra.mxu0 %v476
        %510 = vmatprep.subr.mxu0 %v479
        %511 = vmatpush1.msra.mxu0 %v478
        %512 = vmatprep.subr.mxu0 %v481
        %513 = vmatpush1.msra.mxu0 %v480
        %514 = vmatprep.subr.mxu0 %v483
        %515 = vmatpush1.msra.mxu0 %v482
        %516 = vmatprep.subr.mxu0 %v485
        %517 = vmatpush1.msra.mxu0 %v484
        %518 = vmatprep.subr.mxu0 %v487
        %519 = vmatpush1.msra.mxu0 %v486
        %520 = vmatprep.subr.mxu0 %v489
        %521 = vmatpush1.msra.mxu0 %v488
        %522 = vmatprep.subr.mxu0 %v491
        %523 = vmatpush1.msra.mxu0 %v490
        %524 = vmatprep.subr.mxu0 %v493
        %525 = vmatpush1.msra.mxu0 %v492
        %526 = vmatprep.subr.mxu0 %v495
        %527 = vmatpush1.msra.mxu0 %v494
        %528 = vmatprep.subr.mxu0 %v497
        %529 = vmatpush1.msra.mxu0 %v496
        %530 = vmatprep.subr.mxu0 %v499
        %531 = vmatpush1.msra.mxu0 %v498
        %532 = vmatprep.subr.mxu0 0.0
        %533 = vmatpush1.msra.mxu0 0.0
        %534 = vmatprep.subr.mxu0 0.0
        %535 = vmatpush1.msra.mxu0 0.0
        %536 = vmatprep.subr.mxu0 0.0
        %537 = vmatpush1.msra.mxu0 0.0
        %538 = vmatprep.subr.mxu0 0.0
        %539 = vmatpush1.msra.mxu0 0.0
        %540 = vmatprep.subr.mxu0 0.0
        %541 = vmatpush1.msra.mxu0 0.0
        %542 = vmatprep.subr.mxu0 0.0
        %543 = vmatpush1.msra.mxu0 0.0
        %544 = vmatprep.subr.mxu0 0.0
        %545 = vmatpush1.msra.mxu0 0.0
        %546 = vmatprep.subr.mxu0 0.0
        %547 = vmatpush1.msra.mxu0 0.0
        %548 = vmatprep.subr.mxu0 0.0
        %549 = vmatpush1.msra.mxu0 0.0
        %550 = vmatprep.subr.mxu0 0.0
        %551 = vmatpush1.msra.mxu0 0.0
        %552 = vmatprep.subr.mxu0 0.0
        %553 = vmatpush1.msra.mxu0 0.0
        %554 = vmatprep.subr.mxu0 0.0
        %555 = vmatpush1.msra.mxu0 0.0
        %556 = vmatprep.subr.mxu0 0.0
        %557 = vmatpush1.msra.mxu0 0.0
        %558 = vmatprep.subr.mxu0 0.0
        %559 = vmatpush1.msra.mxu0 0.0
        %560 = vmatprep.subr.mxu0 0.0
        %561 = vmatpush1.msra.mxu0 0.0
        %562 = vmatprep.subr.mxu0 0.0
        %563 = vmatpush1.msra.mxu0 0.0
        %564 = vmatprep.mubr.f32.mxu0 0.0
        %565 = vmatmul.mubr.f32.gmra.mrb[0].mxu0 %v467
        %v566 = vpop.f32.mrb[0].mxu0
        %v567 = vadd.f32 0.0, %v566
        %v568 = vpop.f32.mrb[0].mxu0
        %v569 = vadd.f32 0.0, %v568
        %570 = vdwg.mxu0
        %571 = vst [vmem:[%s332] sm:$0xff] %v567
        %572 = vst [vmem:[%s332 + $0x8] sm:$0xff] %v569
        %s573 = sand.u32 %s182, 1
        %s574 = scalar_lea.sflag [#allocation5], %s573
        %s575 = sand.u32 %s182, 1
        %s576 = smul.addr %s575, 16
        %s577 = scalar_lea.vmem [#allocation9], %s576
        // Predicated region
        $region61: #{tpu_custom_call.1} parent=43 // pred_check
          %p578 = pneg %p192
        $region62: #{tpu_custom_call.1} parent=43 // pred_check_branch
          %580 = sbr.rel (%p578) target = $region64
        $region63: #{tpu_custom_call.1} parent=43 // pred_region
          %s581 = smul.u32 2, %s29
          %s583 = ssub.s32 256, 256
          %584 = vsyncadd %s574, %s583
          %s585 = smul.addr %s28, 4
          %s586 = sadd.s32 %s581, %s585
          %s587 = smul.addr %s586, 128
          %s588 = scalar_lea.hbm %s6, %s587
          %s590 = sshll.u32 %s577, 4
          %s591 = int_to_ptr.vmem [resolvable:$true] %s590
          %593 = dma.vmem_to_hbm [thread:$0]  %s591, 256, %s588, %s574
        $region64: #{tpu_custom_call.1} parent=43 // pred_fallthru
          _
      $region44: #{tpu_custom_call.1} parent=5 // pred_fallthru
        _
      %p594 = scmp.le.s32.totalorder 2, %s19
      // Predicated region
      $region65: #{tpu_custom_call.1} parent=5 // pred_check
        %p595 = pneg %p594
      $region66: #{tpu_custom_call.1} parent=5 // pred_check_branch
        %597 = sbr.rel (%p595) target = $region68
      $region67: #{tpu_custom_call.1} parent=5 // pred_region
        %s598 = ssub.s32 %s19, 2
        // Predicated region
        $region69: #{tpu_custom_call.1} parent=67 // pred_check
          %p599 = pneg %p198
        $region70: #{tpu_custom_call.1} parent=67 // pred_check_branch
          %601 = sbr.rel (%p599) target = $region72
        $region71: #{tpu_custom_call.1} parent=67 // pred_region
          %s602 = sand.u32 %s183, 1
          %s603 = scalar_lea.sflag [#allocation5], %s602
          %s604 = sand.u32 %s183, 1
          %s605 = smul.addr %s604, 16
          %s606 = scalar_lea.vmem [#allocation9], %s605
          %607 = dma.done %s603, 256
        $region72: #{tpu_custom_call.1} parent=67 // pred_fallthru
          _
      $region68: #{tpu_custom_call.1} parent=5 // pred_fallthru
        _
    $region6: #{tpu_custom_call.1} parent=1 // loop_footer
      %s23 = sadd.s32 1, %s19
    $region7: #{tpu_custom_call.1} parent=1 // loop_footer_branch
      %18 = sbr.rel target = $region3
    $region8: #{tpu_custom_call.1} parent=1 // loop_exit
      _
    %608 = vsyncpa [#allocation4], 1
    %s609 = scalar_lea.sflag [#allocation4], 1
    %610 = vsyncpa %s609, 1
    %611 = vsyncpa [#allocation7], 1
    %612 = vsyncpa [#allocation5], 1
    %s613 = scalar_lea.sflag [#allocation5], 1
    %614 = vsyncpa %s613, 1

</llo_original>
